<compile_context>
chip_gen: v7x
topology: tpu7x:2x2x1
jax: 0.10.0
libtpu: 0.0.40
codegen_flags: <defaults>
</compile_context>

<pallas_src>
from functools import partial

import jax
import jax.numpy as jnp
from jax.experimental import pallas as pl
from jax.experimental.pallas import tpu as pltpu


# ------------------------------ tiling helper ------------------------------ #

def _pick_tile(dim, target, align):
    """Largest tile <= target dividing `dim`, preferring `align`-multiples
    (8 for sublane dims, 128 for lane dims).  Never falls back to the full
    dimension for dim > target, avoiding the VMEM blow-up flagged in review."""
    if dim <= target:
        return dim
    t = (target // align) * align
    while t >= align:
        if dim % t == 0:
            return t
        t -= align
    for t in range(min(target, dim), 0, -1):   # unaligned last resort (rare)
        if dim % t == 0:
            return t
    return dim


# --------------------------- tiled matmul kernels --------------------------- #

def _matmul_kernel(x_ref, w_ref, o_ref, acc_ref):
    @pl.when(pl.program_id(2) == 0)
    def _init():
        acc_ref[...] = jnp.zeros_like(acc_ref)

    acc_ref[...] += jnp.dot(x_ref[...], w_ref[...],
                            preferred_element_type=jnp.float32)

    @pl.when(pl.program_id(2) == pl.num_programs(2) - 1)
    def _fin():
        o_ref[...] = acc_ref[...].astype(o_ref.dtype)


def _matmul_norm_kernel(x_ref, w_ref, g_ref, o_ref, acc_ref, *, eps, norm_cols):
    """Matmul with RMSNorm fused into the epilogue over the first `norm_cols`
    output columns (remaining columns pass through, gain 1.0).  Requires the
    whole output row resident (tn == N)."""
    @pl.when(pl.program_id(2) == 0)
    def _init():
        acc_ref[...] = jnp.zeros_like(acc_ref)

    acc_ref[...] += jnp.dot(x_ref[...], w_ref[...],
                            preferred_element_type=jnp.float32)

    @pl.when(pl.program_id(2) == pl.num_programs(2) - 1)
    def _fin():
        y = acc_ref[...]                                         # (tm, N) f32
        col = jax.lax.broadcasted_iota(jnp.int32, y.shape, 1)
        in_norm = col < norm_cols
        ss = jnp.sum(jnp.where(in_norm, y * y, 0.0), axis=-1, keepdims=True)
        inv = jax.lax.rsqrt(ss / norm_cols + eps)
        scale = jnp.where(in_norm, inv, 1.0)
        o_ref[...] = (y * scale * g_ref[...]).astype(o_ref.dtype)


def pallas_matmul(x, w, *, out_dtype=jnp.bfloat16, norm_weight=None,
                  norm_cols=None, eps=1e-6, tm=512, tn=512, tk=512):
    """x: (M, K), w: (K, N) pre-transposed weight.  bf16 operands, f32 accum.
    If `norm_weight` is given, RMSNorm over the first `norm_cols` (default all)
    output columns is fused into the epilogue."""
    M, K = x.shape
    K2, N = w.shape
    assert K == K2

    tk = _pick_tile(K, tk, 128)
    if norm_weight is not None:
        tn = N                           # whole row resident for the fused norm
        # cap the (tm, N) f32 accumulator (~8 MiB) so the fused norm stays well
        # inside v7x's 64 MiB physical / 32 MiB scoped VMEM at large N.
        tm = min(tm, max(8, (8 << 20) // (4 * N)))
    else:
        tn = _pick_tile(N, tn, 128)
    tm = _pick_tile(M, tm, 8)
    grid = (M // tm, N // tn, K // tk)

    if x.dtype != jnp.bfloat16:
        x = x.astype(jnp.bfloat16)
    if w.dtype != jnp.bfloat16:
        w = w.astype(jnp.bfloat16)

    in_specs = [pl.BlockSpec((tm, tk), lambda i, j, k: (i, k)),
                pl.BlockSpec((tk, tn), lambda i, j, k: (k, j))]
    args = [x, w]

    if norm_weight is not None:
        nc = N if norm_cols is None else norm_cols
        assert 0 < nc <= N
        g = norm_weight.astype(jnp.float32)
        if nc < N:
            g = jnp.concatenate([g, jnp.ones((N - nc,), jnp.float32)])
        g = g.reshape(1, N)
        kernel = partial(_matmul_norm_kernel, eps=eps, norm_cols=nc)
        in_specs.append(pl.BlockSpec((1, N), lambda i, j, k: (0, 0)))
        args.append(g)
    else:
        kernel = _matmul_kernel

    return pl.pallas_call(
        kernel,
        out_shape=jax.ShapeDtypeStruct((M, N), out_dtype),
        grid_spec=pltpu.PrefetchScalarGridSpec(
            num_scalar_prefetch=0,
            grid=grid,
            in_specs=in_specs,
            out_specs=pl.BlockSpec((tm, tn), lambda i, j, k: (i, j)),
            scratch_shapes=[pltpu.VMEM((tm, tn), jnp.float32)]),
        compiler_params=pltpu.CompilerParams(
            dimension_semantics=("parallel", "parallel", "arbitrary"),
            vmem_limit_bytes=32 * 1024 * 1024),
    )(*args)


# ----------------------- flash MLA attention kernel ------------------------ #

def _mla_flash_kernel(q_ref, kv_ref, kpe_ref, cos_ref, sin_ref, o_ref,
                      m_sc, l_sc, acc_sc, *, H, dn, dr, dv, tq, tk, scale):
    qi = pl.program_id(1)
    ki = pl.program_id(2)
    nk = pl.num_programs(2)

    @pl.when(ki == 0)
    def _init():
        m_sc[...] = jnp.full_like(m_sc, -jnp.inf)
        l_sc[...] = jnp.zeros_like(l_sc)
        acc_sc[...] = jnp.zeros_like(acc_sc)

    # Causal block skip: only process KV tiles with at least one unmasked col.
    @pl.when(ki * tk < (qi + 1) * tq)
    def _compute():
        q = q_ref[0]          # (tq, H*(dn+dr)) bf16, layout [all nope | all pe(e|o)]
        kvb = kv_ref[0]       # (tk, H*(dn+dv)) bf16, layout [all k_nope | all v]
        kpe = kpe_ref[0]      # (tk, dr)        bf16, rope'd, shared across heads
        cos = cos_ref[0]      # (tq, dr//2)     f32
        sin = sin_ref[0]

        # causal mask generated in-kernel (no HBM mask stream)
        row = qi * tq + jax.lax.broadcasted_iota(jnp.int32, (tq, tk), 0)
        col = ki * tk + jax.lax.broadcasted_iota(jnp.int32, (tq, tk), 1)
        causal = col <= row

        dn_last = (((1,), (1,)), ((), ()))    # contract last dims (no transpose)
        half = dr // 2

        # TODO(synk): at production head counts (H=128), the head axis should be
        # sharded into the grid instead of this static unroll; fine at toy H.
        for h in range(H):
            qn = q[:, h * dn:(h + 1) * dn]                             # (tq, dn)
            qp = q[:, H * dn + h * dr: H * dn + (h + 1) * dr]          # (tq, dr)
            # DeepSeek rope on q_pe, fused in-kernel; columns already [even|odd]
            qe = qp[:, :half].astype(jnp.float32)
            qo = qp[:, half:].astype(jnp.float32)
            qp_rot = jnp.concatenate([qe * cos - qo * sin,
                                      qo * cos + qe * sin], axis=-1)
            # single K=(dn+dr) matmul per head (K-concat fusion)
            qh = jnp.concatenate([qn, qp_rot.astype(jnp.bfloat16)], axis=-1)
            kn = kvb[:, h * dn:(h + 1) * dn]                           # (tk, dn)
            kh = jnp.concatenate([kn, kpe], axis=-1)                   # (tk, dn+dr)
            vh = kvb[:, H * dn + h * dv: H * dn + (h + 1) * dv]        # (tk, dv)

            s = jax.lax.dot_general(qh, kh, dn_last,
                                    preferred_element_type=jnp.float32) * scale
            s = jnp.where(causal, s, -1e30)

            m_prev = m_sc[h]
            m_new = jnp.maximum(m_prev, jnp.max(s, axis=-1, keepdims=True))
            alpha = jnp.exp(m_prev - m_new)
            p = jnp.exp(s - m_new)
            l_sc[h] = alpha * l_sc[h] + jnp.sum(p, axis=-1, keepdims=True)
            acc_sc[h] = alpha * acc_sc[h] + jax.lax.dot_general(
                p.astype(jnp.bfloat16), vh, (((1,), (0,)), ((), ())),
                preferred_element_type=jnp.float32)
            m_sc[h] = m_new

    @pl.when(ki == nk - 1)
    def _fin():
        outs = []
        for h in range(H):
            outs.append(acc_sc[h] * pl.reciprocal(l_sc[h], approx=True))
        o_ref[0] = jnp.concatenate(outs, axis=-1).astype(o_ref.dtype)


def pallas_mla_attention(q, kvb, kpe, cos_q, sin_q, scale,
                         *, H, dn, dr, dv, tq=256, tk=256):
    """q: (B,S,H*(dn+dr)) bf16, kvb: (B,S,H*(dn+dv)) bf16, kpe: (B,S,dr) bf16
    (rope'd, shared across heads), cos_q/sin_q: (B,S,dr//2) f32.
    Returns (B,S,H*dv) bf16 with heads in h-major order (o_proj-ready)."""
    B, S, _ = q.shape
    tq = _pick_tile(S, tq, 8)
    tk = _pick_tile(S, tk, 8)
    grid = (B, S // tq, S // tk)

    kernel = partial(_mla_flash_kernel, H=H, dn=dn, dr=dr, dv=dv,
                     tq=tq, tk=tk, scale=scale)
    return pl.pallas_call(
        kernel,
        out_shape=jax.ShapeDtypeStruct((B, S, H * dv), jnp.bfloat16),
        grid_spec=pltpu.PrefetchScalarGridSpec(
            num_scalar_prefetch=0,
            grid=grid,
            in_specs=[
                pl.BlockSpec((1, tq, H * (dn + dr)), lambda b, qi, ki: (b, qi, 0)),
                pl.BlockSpec((1, tk, H * (dn + dv)), lambda b, qi, ki: (b, ki, 0)),
                pl.BlockSpec((1, tk, dr),            lambda b, qi, ki: (b, ki, 0)),
                pl.BlockSpec((1, tq, dr // 2),       lambda b, qi, ki: (b, qi, 0)),
                pl.BlockSpec((1, tq, dr // 2),       lambda b, qi, ki: (b, qi, 0)),
            ],
            out_specs=pl.BlockSpec((1, tq, H * dv), lambda b, qi, ki: (b, qi, 0)),
            scratch_shapes=[pltpu.VMEM((H, tq, 1), jnp.float32),
                            pltpu.VMEM((H, tq, 1), jnp.float32),
                            pltpu.VMEM((H, tq, dv), jnp.float32)]),
        compiler_params=pltpu.CompilerParams(
            dimension_semantics=("parallel", "parallel", "arbitrary"),
            vmem_limit_bytes=32 * 1024 * 1024),
    )(q, kvb, kpe, cos_q, sin_q)


# ------------------------------ model setup --------------------------------- #

class Config:
    hidden_size = 64
    num_attention_heads = 2
    q_lora_rank = 32
    kv_lora_rank = 32
    qk_nope_head_dim = 32
    qk_rope_head_dim = 16
    v_head_dim = 32
    rope_theta = 10000.0


def init_params(cfg, key):
    """PyTorch-convention (out, in) weights, f32, bias-free."""
    H = cfg.num_attention_heads
    q_head_dim = cfg.qk_nope_head_dim + cfg.qk_rope_head_dim
    ks = jax.random.split(key, 5)
    s = 0.02
    return {
        "q_a_proj": jax.random.normal(ks[0], (cfg.q_lora_rank, cfg.hidden_size), jnp.float32) * s,
        "q_a_ln": jnp.ones((cfg.q_lora_rank,), jnp.float32),
        "q_b_proj": jax.random.normal(ks[1], (H * q_head_dim, cfg.q_lora_rank), jnp.float32) * s,
        "kv_a_proj": jax.random.normal(
            ks[2], (cfg.kv_lora_rank + cfg.qk_rope_head_dim, cfg.hidden_size), jnp.float32) * s,
        "kv_a_ln": jnp.ones((cfg.kv_lora_rank,), jnp.float32),
        "kv_b_proj": jax.random.normal(
            ks[3], (H * (cfg.qk_nope_head_dim + cfg.v_head_dim), cfg.kv_lora_rank), jnp.float32) * s,
        "o_proj": jax.random.normal(ks[4], (cfg.hidden_size, H * cfg.v_head_dim), jnp.float32) * s,
    }


def prepare_params(cfg, raw):
    """Pre-transpose to (in, out), bf16-cast, and permute output columns so that
    (a) heads are stored contiguously per field (no runtime transposes) and
    (b) rope inputs arrive in [even|odd] (blocked) order, absorbing the DeepSeek
    interleaved->blocked rope permute into the weights at zero runtime cost."""
    H = cfg.num_attention_heads
    dn, dr, dv = cfg.qk_nope_head_dim, cfg.qk_rope_head_dim, cfg.v_head_dim
    q_head_dim = dn + dr

    def eo(base):   # even-first / odd-second ordering of a rope block
        return ([base + 2 * j for j in range(dr // 2)]
                + [base + 2 * j + 1 for j in range(dr // 2)])

    perm_qb = ([h * q_head_dim + d for h in range(H) for d in range(dn)]
               + [i for h in range(H) for i in eo(h * q_head_dim + dn)])
    perm_kva = list(range(cfg.kv_lora_rank)) + eo(cfg.kv_lora_rank)
    perm_kvb = ([h * (dn + dv) + d for h in range(H) for d in range(dn)]
                + [h * (dn + dv) + dn + d for h in range(H) for d in range(dv)])

    return {
        "q_a_proj_t": raw["q_a_proj"].T.astype(jnp.bfloat16),
        "q_a_ln": raw["q_a_ln"].astype(jnp.float32),
        "q_b_proj_t": raw["q_b_proj"].T[:, jnp.array(perm_qb)].astype(jnp.bfloat16),
        "kv_a_proj_t": raw["kv_a_proj"].T[:, jnp.array(perm_kva)].astype(jnp.bfloat16),
        "kv_a_ln": raw["kv_a_ln"].astype(jnp.float32),
        "kv_b_proj_t": raw["kv_b_proj"].T[:, jnp.array(perm_kvb)].astype(jnp.bfloat16),
        "o_proj_t": raw["o_proj"].T.astype(jnp.bfloat16),
    }


def make_rope_cache(cfg, max_pos):
    d = cfg.qk_rope_head_dim
    inv_freq = 1.0 / (cfg.rope_theta ** (jnp.arange(0, d, 2, dtype=jnp.float32) / d))
    t = jnp.arange(max_pos, dtype=jnp.float32)
    freqs = jnp.outer(t, inv_freq)
    emb = jnp.concatenate([freqs, freqs], axis=-1)
    return jnp.cos(emb), jnp.sin(emb)


# ------------------------------ forward pass -------------------------------- #

def prefill_attn_forward(cfg, params, x, mask, position_ids, cos, sin):
    B, S, Dh = x.shape
    H = cfg.num_attention_heads
    dn, dr, dv = cfg.qk_nope_head_dim, cfg.qk_rope_head_dim, cfg.v_head_dim
    kv_lora = cfg.kv_lora_rank
    scale = (dn + dr) ** (-0.5)

    # TODO(synk): `mask` is assumed to be the standard causal prefill mask; it is
    # regenerated in-kernel (per review) instead of being streamed from HBM.
    del mask

    x2 = x.reshape(B * S, Dh).astype(jnp.bfloat16)         # single cast of x

    # query path: q_a_proj + RMSNorm fused, then q_b_proj (weights pre-permuted)
    q_a = pallas_matmul(x2, params["q_a_proj_t"],
                        norm_weight=params["q_a_ln"], out_dtype=jnp.bfloat16)
    q = pallas_matmul(q_a, params["q_b_proj_t"], out_dtype=jnp.bfloat16)
    q = q.reshape(B, S, H * (dn + dr))                      # no transpose

    # kv path: kv_a_proj with RMSNorm fused on the latent columns
    ckv = pallas_matmul(x2, params["kv_a_proj_t"],
                        norm_weight=params["kv_a_ln"], norm_cols=kv_lora,
                        out_dtype=jnp.bfloat16)
    ckv = ckv.reshape(B, S, kv_lora + dr)
    ckv_norm = ckv[..., :kv_lora]
    kpe_raw = ckv[..., kv_lora:]                            # (B,S,dr) [even|odd]

    kvb = pallas_matmul(ckv_norm.reshape(B * S, kv_lora),
                        params["kv_b_proj_t"], out_dtype=jnp.bfloat16)
    kvb = kvb.reshape(B, S, H * (dn + dv))                  # no transpose

    # rope on k_pe (tiny, shared across heads) in plain JAX; also reused by the
    # kv cache.  q_pe rope happens inside the attention kernel.
    half = dr // 2
    cos_g = cos[position_ids][..., :half].astype(jnp.float32)   # (B,S,dr/2)
    sin_g = sin[position_ids][..., :half].astype(jnp.float32)
    ke = kpe_raw[..., :half].astype(jnp.float32)
    ko = kpe_raw[..., half:].astype(jnp.float32)
    kpe_rope = jnp.concatenate([ke * cos_g - ko * sin_g,
                                ko * cos_g + ke * sin_g], axis=-1)   # (B,S,dr) f32

    # flash MLA attention: in-kernel causal mask + tile skipping, fused q rope,
    # single (dn+dr)-deep score matmul per head, bf16 operands / f32 accumulate.
    attn = pallas_mla_attention(q, kvb, kpe_rope.astype(jnp.bfloat16),
                                cos_g, sin_g, scale, H=H, dn=dn, dr=dr, dv=dv)

    attn_out = pallas_matmul(attn.reshape(B * S, H * dv), params["o_proj_t"],
                             out_dtype=jnp.float32).reshape(B, S, Dh)

    # TODO(synk): the test helper's exact `kv` return convention (pre/post
    # RMSNorm latent, pre/post rope k_pe) is not visible from the provided
    # snippet; returning the MLA latent cache (normalized latent ++ rope'd k_pe).
    kv_cache = jnp.concatenate([ckv_norm.astype(jnp.float32), kpe_rope], axis=-1)
    return attn_out, kv_cache


# --------------------------------- main -------------------------------------- #

if __name__ == "__main__":
    cfg = Config()
    B, S = 2, 8

    key = jax.random.PRNGKey(0)
    k_params, k_x = jax.random.split(key)
    params = prepare_params(cfg, init_params(cfg, k_params))

    x = jax.random.normal(k_x, (B, S, cfg.hidden_size), jnp.float32)

    # causal additive attention mask, kept for signature compatibility with the
    # PyTorch module (the kernel regenerates it internally).
    i = jnp.arange(S)[:, None]
    j = jnp.arange(S)[None, :]
    causal = jnp.where(j <= i, 0.0, -1e9).astype(jnp.float32)
    mask = jnp.broadcast_to(causal, (B, 1, S, S))

    position_ids = jnp.broadcast_to(jnp.arange(S, dtype=jnp.int32), (B, S))
    cos, sin = make_rope_cache(cfg, S)

    fwd = jax.jit(partial(prefill_attn_forward, cfg, params))
    attn_out, kv = fwd(x, mask, position_ids, cos, sin)
    jax.block_until_ready((attn_out, kv))

    assert attn_out.shape == (B, S, cfg.hidden_size)
    assert kv.shape == (B, S, cfg.kv_lora_rank + cfg.qk_rope_head_dim)
    assert bool(jnp.all(jnp.isfinite(attn_out))) and bool(jnp.all(jnp.isfinite(kv)))

    print("KERNEL_OK")
</pallas_src>

<mosaic_0001>
module attributes {stable_mosaic.version = 11 : i64} {
  func.func @_matmul_norm_kernel(%arg0: i32, %arg1: i32, %arg2: i32, %arg3: memref<16x64xbf16, #tpu.memory_space<vmem>>, %arg4: memref<64x48xbf16, #tpu.memory_space<vmem>>, %arg5: memref<1x48xf32, #tpu.memory_space<vmem>>, %arg6: memref<16x48xbf16, #tpu.memory_space<vmem>>, %arg7: memref<16x48xf32, #tpu.memory_space<vmem>>) attributes {dimension_semantics = [#tpu.dimension_semantics<parallel>, #tpu.dimension_semantics<parallel>, #tpu.dimension_semantics<arbitrary>], iteration_bounds = array<i64: 1, 1, 1>, scalar_prefetch = 0 : i64, scratch_operands = 1 : i64, tpu.core_type = #tpu.core_type<tc>, window_params = [{transform_indices = @transform_0, window_bounds = array<i64: 16, 64>}, {transform_indices = @transform_1, window_bounds = array<i64: 64, 48>}, {pipeline_mode = #tpu.pipeline_mode<synchronous>, transform_indices = @transform_2, window_bounds = array<i64: 1, 48>}, {transform_indices = @transform_3, window_bounds = array<i64: 16, 48>}]} {
    %c0_i32 = arith.constant 0 : i32
    %0 = arith.cmpi eq, %arg2, %c0_i32 : i32
    %1 = arith.extui %0 : i1 to i32
    %c0_i32_0 = arith.constant 0 : i32
    %2 = arith.cmpi ne, %1, %c0_i32_0 : i32
    scf.if %2 {
      %cst_10 = arith.constant 0.000000e+00 : f32
      %12 = vector.broadcast %cst_10 : f32 to vector<16x48xf32>
      %c0_11 = arith.constant 0 : index
      %c0_12 = arith.constant 0 : index
      %13 = vector.load %arg7[%c0_11, %c0_12] : memref<16x48xf32, #tpu.memory_space<vmem>>, vector<16x48xf32>
      tpu.vector_store %arg7[%c0_11, %c0_12], %12 {strides = array<i32>} : memref<16x48xf32, #tpu.memory_space<vmem>>, vector<16x48xf32>,
    } else {
    }
    %c0 = arith.constant 0 : index
    %c0_1 = arith.constant 0 : index
    %3 = vector.load %arg7[%c0, %c0_1] : memref<16x48xf32, #tpu.memory_space<vmem>>, vector<16x48xf32>
    %c0_2 = arith.constant 0 : index
    %c0_3 = arith.constant 0 : index
    %4 = vector.load %arg3[%c0_2, %c0_3] : memref<16x64xbf16, #tpu.memory_space<vmem>>, vector<16x64xbf16>
    %c0_4 = arith.constant 0 : index
    %c0_5 = arith.constant 0 : index
    %5 = vector.load %arg4[%c0_4, %c0_5] : memref<64x48xbf16, #tpu.memory_space<vmem>>, vector<64x48xbf16>
    %cst = arith.constant dense<0.000000e+00> : vector<16x48xf32>
    %6 = tpu.matmul %4, %5, %cst {dimension_numbers = #tpu.dot_dimension_numbers<[1], [0], [0], [1], [0, 0, 1, 1], [], []>} : vector<16x64xbf16>, vector<64x48xbf16>, vector<16x48xf32> -> vector<16x48xf32>
    %7 = arith.addf %3, %6 : vector<16x48xf32>
    %c0_6 = arith.constant 0 : index
    %c0_7 = arith.constant 0 : index
    %8 = vector.load %arg7[%c0_6, %c0_7] : memref<16x48xf32, #tpu.memory_space<vmem>>, vector<16x48xf32>
    tpu.vector_store %arg7[%c0_6, %c0_7], %7 {strides = array<i32>} : memref<16x48xf32, #tpu.memory_space<vmem>>, vector<16x48xf32>,
    %c0_i32_8 = arith.constant 0 : i32
    %9 = arith.cmpi eq, %arg2, %c0_i32_8 : i32
    %10 = arith.extui %9 : i1 to i32
    %c0_i32_9 = arith.constant 0 : i32
    %11 = arith.cmpi ne, %10, %c0_i32_9 : i32
    scf.if %11 {
      %c0_10 = arith.constant 0 : index
      %c0_11 = arith.constant 0 : index
      %12 = vector.load %arg7[%c0_10, %c0_11] : memref<16x48xf32, #tpu.memory_space<vmem>>, vector<16x48xf32>
      %13 = tpu.iota {dimensions = array<i32: 1>} : vector<16x48xi32>
      %c32_i32 = arith.constant 32 : i32
      %14 = vector.broadcast %c32_i32 : i32 to vector<16x48xi32>
      %15 = arith.cmpi slt, %13, %14 : vector<16x48xi32>
      %16 = arith.mulf %12, %12 : vector<16x48xf32>
      %cst_12 = arith.constant 0.000000e+00 : f32
      %17 = vector.broadcast %cst_12 : f32 to vector<16x48xf32>
      %18 = arith.select %15, %16, %17 : vector<16x48xi1>, vector<16x48xf32>
      %cst_13 = arith.constant dense<0.000000e+00> : vector<16xf32>
      %19 = vector.multi_reduction <add>, %18, %cst_13 [1] : vector<16x48xf32> to vector<16xf32>
      %20 = vector.shape_cast %19 : vector<16xf32> to vector<16x1xf32>
      %cst_14 = arith.constant 3.200000e+01 : f32
      %21 = vector.broadcast %cst_14 : f32 to vector<16x1xf32>
      %22 = arith.divf %20, %21 : vector<16x1xf32>
      %cst_15 = arith.constant 9.99999997E-7 : f32
      %23 = vector.broadcast %cst_15 : f32 to vector<16x1xf32>
      %24 = arith.addf %22, %23 : vector<16x1xf32>
      %25 = math.rsqrt %24 : vector<16x1xf32>
      %cst_16 = arith.constant 1.000000e+00 : f32
      %26 = vector.shape_cast %25 : vector<16x1xf32> to vector<16x1xf32>
      %27 = vector.broadcast %26 : vector<16x1xf32> to vector<16x48xf32>
      %28 = vector.broadcast %cst_16 : f32 to vector<16x48xf32>
      %29 = arith.select %15, %27, %28 : vector<16x48xi1>, vector<16x48xf32>
      %30 = arith.mulf %12, %29 : vector<16x48xf32>
      %c0_17 = arith.constant 0 : index
      %c0_18 = arith.constant 0 : index
      %31 = vector.load %arg5[%c0_17, %c0_18] : memref<1x48xf32, #tpu.memory_space<vmem>>, vector<1x48xf32>
      %32 = vector.broadcast %31 : vector<1x48xf32> to vector<16x48xf32>
      %33 = arith.mulf %30, %32 : vector<16x48xf32>
      %34 = arith.truncf %33 : vector<16x48xf32> to vector<16x48xbf16>
      %c0_19 = arith.constant 0 : index
      %c0_20 = arith.constant 0 : index
      %35 = vector.load %arg6[%c0_19, %c0_20] : memref<16x48xbf16, #tpu.memory_space<vmem>>, vector<16x48xbf16>
      tpu.vector_store %arg6[%c0_19, %c0_20], %34 {strides = array<i32>} : memref<16x48xbf16, #tpu.memory_space<vmem>>, vector<16x48xbf16>,
    } else {
    }
    return
  }
  func.func @transform_0(%arg0: i32, %arg1: i32, %arg2: i32) -> (i32, i32) {
    %c0_i32 = arith.constant 0 : i32
    return %arg0, %arg2 : i32, i32
  }
  func.func @transform_1(%arg0: i32, %arg1: i32, %arg2: i32) -> (i32, i32) {
    %c0_i32 = arith.constant 0 : i32
    return %arg2, %arg1 : i32, i32
  }
  func.func @transform_2(%arg0: i32, %arg1: i32, %arg2: i32) -> (i32, i32) {
    %c0_i32 = arith.constant 0 : i32
    %c0_i32_0 = arith.constant 0 : i32
    %c0_i32_1 = arith.constant 0 : i32
    return %c0_i32, %c0_i32_0 : i32, i32
  }
  func.func @transform_3(%arg0: i32, %arg1: i32, %arg2: i32) -> (i32, i32) {
    %c0_i32 = arith.constant 0 : i32
    return %arg0, %arg1 : i32, i32
  }
}

module attributes {stable_mosaic.version = 11 : i64} {
  func.func @_matmul_kernel(%arg0: i32, %arg1: i32, %arg2: i32, %arg3: memref<16x32xbf16, #tpu.memory_space<vmem>>, %arg4: memref<32x128xbf16, #tpu.memory_space<vmem>>, %arg5: memref<16x128xbf16, #tpu.memory_space<vmem>>, %arg6: memref<16x128xf32, #tpu.memory_space<vmem>>) attributes {dimension_semantics = [#tpu.dimension_semantics<parallel>, #tpu.dimension_semantics<parallel>, #tpu.dimension_semantics<arbitrary>], iteration_bounds = array<i64: 1, 1, 1>, scalar_prefetch = 0 : i64, scratch_operands = 1 : i64, tpu.core_type = #tpu.core_type<tc>, window_params = [{transform_indices = @transform_0, window_bounds = array<i64: 16, 32>}, {transform_indices = @transform_1, window_bounds = array<i64: 32, 128>}, {transform_indices = @transform_2, window_bounds = array<i64: 16, 128>}]} {
    %c0_i32 = arith.constant 0 : i32
    %0 = arith.cmpi eq, %arg2, %c0_i32 : i32
    %1 = arith.extui %0 : i1 to i32
    %c0_i32_0 = arith.constant 0 : i32
    %2 = arith.cmpi ne, %1, %c0_i32_0 : i32
    scf.if %2 {
      %cst_10 = arith.constant 0.000000e+00 : f32
      %12 = vector.broadcast %cst_10 : f32 to vector<16x128xf32>
      %c0_11 = arith.constant 0 : index
      %c0_12 = arith.constant 0 : index
      %13 = vector.load %arg6[%c0_11, %c0_12] : memref<16x128xf32, #tpu.memory_space<vmem>>, vector<16x128xf32>
      tpu.vector_store %arg6[%c0_11, %c0_12], %12 {strides = array<i32>} : memref<16x128xf32, #tpu.memory_space<vmem>>, vector<16x128xf32>,
    } else {
    }
    %c0 = arith.constant 0 : index
    %c0_1 = arith.constant 0 : index
    %3 = vector.load %arg6[%c0, %c0_1] : memref<16x128xf32, #tpu.memory_space<vmem>>, vector<16x128xf32>
    %c0_2 = arith.constant 0 : index
    %c0_3 = arith.constant 0 : index
    %4 = vector.load %arg3[%c0_2, %c0_3] : memref<16x32xbf16, #tpu.memory_space<vmem>>, vector<16x32xbf16>
    %c0_4 = arith.constant 0 : index
    %c0_5 = arith.constant 0 : index
    %5 = vector.load %arg4[%c0_4, %c0_5] : memref<32x128xbf16, #tpu.memory_space<vmem>>, vector<32x128xbf16>
    %cst = arith.constant dense<0.000000e+00> : vector<16x128xf32>
    %6 = tpu.matmul %4, %5, %cst {dimension_numbers = #tpu.dot_dimension_numbers<[1], [0], [0], [1], [0, 0, 1, 1], [], []>} : vector<16x32xbf16>, vector<32x128xbf16>, vector<16x128xf32> -> vector<16x128xf32>
    %7 = arith.addf %3, %6 : vector<16x128xf32>
    %c0_6 = arith.constant 0 : index
    %c0_7 = arith.constant 0 : index
    %8 = vector.load %arg6[%c0_6, %c0_7] : memref<16x128xf32, #tpu.memory_space<vmem>>, vector<16x128xf32>
    tpu.vector_store %arg6[%c0_6, %c0_7], %7 {strides = array<i32>} : memref<16x128xf32, #tpu.memory_space<vmem>>, vector<16x128xf32>,
    %c0_i32_8 = arith.constant 0 : i32
    %9 = arith.cmpi eq, %arg2, %c0_i32_8 : i32
    %10 = arith.extui %9 : i1 to i32
    %c0_i32_9 = arith.constant 0 : i32
    %11 = arith.cmpi ne, %10, %c0_i32_9 : i32
    scf.if %11 {
      %c0_10 = arith.constant 0 : index
      %c0_11 = arith.constant 0 : index
      %12 = vector.load %arg6[%c0_10, %c0_11] : memref<16x128xf32, #tpu.memory_space<vmem>>, vector<16x128xf32>
      %13 = arith.truncf %12 : vector<16x128xf32> to vector<16x128xbf16>
      %c0_12 = arith.constant 0 : index
      %c0_13 = arith.constant 0 : index
      %14 = vector.load %arg5[%c0_12, %c0_13] : memref<16x128xbf16, #tpu.memory_space<vmem>>, vector<16x128xbf16>
      tpu.vector_store %arg5[%c0_12, %c0_13], %13 {strides = array<i32>} : memref<16x128xbf16, #tpu.memory_space<vmem>>, vector<16x128xbf16>,
    } else {
    }
    return
  }
  func.func @transform_0(%arg0: i32, %arg1: i32, %arg2: i32) -> (i32, i32) {
    %c0_i32 = arith.constant 0 : i32
    return %arg0, %arg2 : i32, i32
  }
  func.func @transform_1(%arg0: i32, %arg1: i32, %arg2: i32) -> (i32, i32) {
    %c0_i32 = arith.constant 0 : i32
    return %arg2, %arg1 : i32, i32
  }
  func.func @transform_2(%arg0: i32, %arg1: i32, %arg2: i32) -> (i32, i32) {
    %c0_i32 = arith.constant 0 : i32
    return %arg0, %arg1 : i32, i32
  }
}

module attributes {stable_mosaic.version = 11 : i64} {
  func.func @_matmul_kernel(%arg0: i32, %arg1: i32, %arg2: i32, %arg3: memref<16x32xbf16, #tpu.memory_space<vmem>>, %arg4: memref<32x96xbf16, #tpu.memory_space<vmem>>, %arg5: memref<16x96xbf16, #tpu.memory_space<vmem>>, %arg6: memref<16x96xf32, #tpu.memory_space<vmem>>) attributes {dimension_semantics = [#tpu.dimension_semantics<parallel>, #tpu.dimension_semantics<parallel>, #tpu.dimension_semantics<arbitrary>], iteration_bounds = array<i64: 1, 1, 1>, scalar_prefetch = 0 : i64, scratch_operands = 1 : i64, tpu.core_type = #tpu.core_type<tc>, window_params = [{transform_indices = @transform_0, window_bounds = array<i64: 16, 32>}, {transform_indices = @transform_1, window_bounds = array<i64: 32, 96>}, {transform_indices = @transform_2, window_bounds = array<i64: 16, 96>}]} {
    %c0_i32 = arith.constant 0 : i32
    %0 = arith.cmpi eq, %arg2, %c0_i32 : i32
    %1 = arith.extui %0 : i1 to i32
    %c0_i32_0 = arith.constant 0 : i32
    %2 = arith.cmpi ne, %1, %c0_i32_0 : i32
    scf.if %2 {
      %cst_10 = arith.constant 0.000000e+00 : f32
      %12 = vector.broadcast %cst_10 : f32 to vector<16x96xf32>
      %c0_11 = arith.constant 0 : index
      %c0_12 = arith.constant 0 : index
      %13 = vector.load %arg6[%c0_11, %c0_12] : memref<16x96xf32, #tpu.memory_space<vmem>>, vector<16x96xf32>
      tpu.vector_store %arg6[%c0_11, %c0_12], %12 {strides = array<i32>} : memref<16x96xf32, #tpu.memory_space<vmem>>, vector<16x96xf32>,
    } else {
    }
    %c0 = arith.constant 0 : index
    %c0_1 = arith.constant 0 : index
    %3 = vector.load %arg6[%c0, %c0_1] : memref<16x96xf32, #tpu.memory_space<vmem>>, vector<16x96xf32>
    %c0_2 = arith.constant 0 : index
    %c0_3 = arith.constant 0 : index
    %4 = vector.load %arg3[%c0_2, %c0_3] : memref<16x32xbf16, #tpu.memory_space<vmem>>, vector<16x32xbf16>
    %c0_4 = arith.constant 0 : index
    %c0_5 = arith.constant 0 : index
    %5 = vector.load %arg4[%c0_4, %c0_5] : memref<32x96xbf16, #tpu.memory_space<vmem>>, vector<32x96xbf16>
    %cst = arith.constant dense<0.000000e+00> : vector<16x96xf32>
    %6 = tpu.matmul %4, %5, %cst {dimension_numbers = #tpu.dot_dimension_numbers<[1], [0], [0], [1], [0, 0, 1, 1], [], []>} : vector<16x32xbf16>, vector<32x96xbf16>, vector<16x96xf32> -> vector<16x96xf32>
    %7 = arith.addf %3, %6 : vector<16x96xf32>
    %c0_6 = arith.constant 0 : index
    %c0_7 = arith.constant 0 : index
    %8 = vector.load %arg6[%c0_6, %c0_7] : memref<16x96xf32, #tpu.memory_space<vmem>>, vector<16x96xf32>
    tpu.vector_store %arg6[%c0_6, %c0_7], %7 {strides = array<i32>} : memref<16x96xf32, #tpu.memory_space<vmem>>, vector<16x96xf32>,
    %c0_i32_8 = arith.constant 0 : i32
    %9 = arith.cmpi eq, %arg2, %c0_i32_8 : i32
    %10 = arith.extui %9 : i1 to i32
    %c0_i32_9 = arith.constant 0 : i32
    %11 = arith.cmpi ne, %10, %c0_i32_9 : i32
    scf.if %11 {
      %c0_10 = arith.constant 0 : index
      %c0_11 = arith.constant 0 : index
      %12 = vector.load %arg6[%c0_10, %c0_11] : memref<16x96xf32, #tpu.memory_space<vmem>>, vector<16x96xf32>
      %13 = arith.truncf %12 : vector<16x96xf32> to vector<16x96xbf16>
      %c0_12 = arith.constant 0 : index
      %c0_13 = arith.constant 0 : index
      %14 = vector.load %arg5[%c0_12, %c0_13] : memref<16x96xbf16, #tpu.memory_space<vmem>>, vector<16x96xbf16>
      tpu.vector_store %arg5[%c0_12, %c0_13], %13 {strides = array<i32>} : memref<16x96xbf16, #tpu.memory_space<vmem>>, vector<16x96xbf16>,
    } else {
    }
    return
  }
  func.func @transform_0(%arg0: i32, %arg1: i32, %arg2: i32) -> (i32, i32) {
    %c0_i32 = arith.constant 0 : i32
    return %arg0, %arg2 : i32, i32
  }
  func.func @transform_1(%arg0: i32, %arg1: i32, %arg2: i32) -> (i32, i32) {
    %c0_i32 = arith.constant 0 : i32
    return %arg2, %arg1 : i32, i32
  }
  func.func @transform_2(%arg0: i32, %arg1: i32, %arg2: i32) -> (i32, i32) {
    %c0_i32 = arith.constant 0 : i32
    return %arg0, %arg1 : i32, i32
  }
}

module attributes {stable_mosaic.version = 11 : i64} {
  func.func @_matmul_norm_kernel(%arg0: i32, %arg1: i32, %arg2: i32, %arg3: memref<16x64xbf16, #tpu.memory_space<vmem>>, %arg4: memref<64x32xbf16, #tpu.memory_space<vmem>>, %arg5: memref<1x32xf32, #tpu.memory_space<vmem>>, %arg6: memref<16x32xbf16, #tpu.memory_space<vmem>>, %arg7: memref<16x32xf32, #tpu.memory_space<vmem>>) attributes {dimension_semantics = [#tpu.dimension_semantics<parallel>, #tpu.dimension_semantics<parallel>, #tpu.dimension_semantics<arbitrary>], iteration_bounds = array<i64: 1, 1, 1>, scalar_prefetch = 0 : i64, scratch_operands = 1 : i64, tpu.core_type = #tpu.core_type<tc>, window_params = [{transform_indices = @transform_0, window_bounds = array<i64: 16, 64>}, {transform_indices = @transform_1, window_bounds = array<i64: 64, 32>}, {pipeline_mode = #tpu.pipeline_mode<synchronous>, transform_indices = @transform_2, window_bounds = array<i64: 1, 32>}, {transform_indices = @transform_3, window_bounds = array<i64: 16, 32>}]} {
    %c0_i32 = arith.constant 0 : i32
    %0 = arith.cmpi eq, %arg2, %c0_i32 : i32
    %1 = arith.extui %0 : i1 to i32
    %c0_i32_0 = arith.constant 0 : i32
    %2 = arith.cmpi ne, %1, %c0_i32_0 : i32
    scf.if %2 {
      %cst_10 = arith.constant 0.000000e+00 : f32
      %12 = vector.broadcast %cst_10 : f32 to vector<16x32xf32>
      %c0_11 = arith.constant 0 : index
      %c0_12 = arith.constant 0 : index
      %13 = vector.load %arg7[%c0_11, %c0_12] : memref<16x32xf32, #tpu.memory_space<vmem>>, vector<16x32xf32>
      tpu.vector_store %arg7[%c0_11, %c0_12], %12 {strides = array<i32>} : memref<16x32xf32, #tpu.memory_space<vmem>>, vector<16x32xf32>,
    } else {
    }
    %c0 = arith.constant 0 : index
    %c0_1 = arith.constant 0 : index
    %3 = vector.load %arg7[%c0, %c0_1] : memref<16x32xf32, #tpu.memory_space<vmem>>, vector<16x32xf32>
    %c0_2 = arith.constant 0 : index
    %c0_3 = arith.constant 0 : index
    %4 = vector.load %arg3[%c0_2, %c0_3] : memref<16x64xbf16, #tpu.memory_space<vmem>>, vector<16x64xbf16>
    %c0_4 = arith.constant 0 : index
    %c0_5 = arith.constant 0 : index
    %5 = vector.load %arg4[%c0_4, %c0_5] : memref<64x32xbf16, #tpu.memory_space<vmem>>, vector<64x32xbf16>
    %cst = arith.constant dense<0.000000e+00> : vector<16x32xf32>
    %6 = tpu.matmul %4, %5, %cst {dimension_numbers = #tpu.dot_dimension_numbers<[1], [0], [0], [1], [0, 0, 1, 1], [], []>} : vector<16x64xbf16>, vector<64x32xbf16>, vector<16x32xf32> -> vector<16x32xf32>
    %7 = arith.addf %3, %6 : vector<16x32xf32>
    %c0_6 = arith.constant 0 : index
    %c0_7 = arith.constant 0 : index
    %8 = vector.load %arg7[%c0_6, %c0_7] : memref<16x32xf32, #tpu.memory_space<vmem>>, vector<16x32xf32>
    tpu.vector_store %arg7[%c0_6, %c0_7], %7 {strides = array<i32>} : memref<16x32xf32, #tpu.memory_space<vmem>>, vector<16x32xf32>,
    %c0_i32_8 = arith.constant 0 : i32
    %9 = arith.cmpi eq, %arg2, %c0_i32_8 : i32
    %10 = arith.extui %9 : i1 to i32
    %c0_i32_9 = arith.constant 0 : i32
    %11 = arith.cmpi ne, %10, %c0_i32_9 : i32
    scf.if %11 {
      %c0_10 = arith.constant 0 : index
      %c0_11 = arith.constant 0 : index
      %12 = vector.load %arg7[%c0_10, %c0_11] : memref<16x32xf32, #tpu.memory_space<vmem>>, vector<16x32xf32>
      %13 = tpu.iota {dimensions = array<i32: 1>} : vector<16x32xi32>
      %c32_i32 = arith.constant 32 : i32
      %14 = vector.broadcast %c32_i32 : i32 to vector<16x32xi32>
      %15 = arith.cmpi slt, %13, %14 : vector<16x32xi32>
      %16 = arith.mulf %12, %12 : vector<16x32xf32>
      %cst_12 = arith.constant 0.000000e+00 : f32
      %17 = vector.broadcast %cst_12 : f32 to vector<16x32xf32>
      %18 = arith.select %15, %16, %17 : vector<16x32xi1>, vector<16x32xf32>
      %cst_13 = arith.constant dense<0.000000e+00> : vector<16xf32>
      %19 = vector.multi_reduction <add>, %18, %cst_13 [1] : vector<16x32xf32> to vector<16xf32>
      %20 = vector.shape_cast %19 : vector<16xf32> to vector<16x1xf32>
      %cst_14 = arith.constant 3.200000e+01 : f32
      %21 = vector.broadcast %cst_14 : f32 to vector<16x1xf32>
      %22 = arith.divf %20, %21 : vector<16x1xf32>
      %cst_15 = arith.constant 9.99999997E-7 : f32
      %23 = vector.broadcast %cst_15 : f32 to vector<16x1xf32>
      %24 = arith.addf %22, %23 : vector<16x1xf32>
      %25 = math.rsqrt %24 : vector<16x1xf32>
      %cst_16 = arith.constant 1.000000e+00 : f32
      %26 = vector.shape_cast %25 : vector<16x1xf32> to vector<16x1xf32>
      %27 = vector.broadcast %26 : vector<16x1xf32> to vector<16x32xf32>
      %28 = vector.broadcast %cst_16 : f32 to vector<16x32xf32>
      %29 = arith.select %15, %27, %28 : vector<16x32xi1>, vector<16x32xf32>
      %30 = arith.mulf %12, %29 : vector<16x32xf32>
      %c0_17 = arith.constant 0 : index
      %c0_18 = arith.constant 0 : index
      %31 = vector.load %arg5[%c0_17, %c0_18] : memref<1x32xf32, #tpu.memory_space<vmem>>, vector<1x32xf32>
      %32 = vector.broadcast %31 : vector<1x32xf32> to vector<16x32xf32>
      %33 = arith.mulf %30, %32 : vector<16x32xf32>
      %34 = arith.truncf %33 : vector<16x32xf32> to vector<16x32xbf16>
      %c0_19 = arith.constant 0 : index
      %c0_20 = arith.constant 0 : index
      %35 = vector.load %arg6[%c0_19, %c0_20] : memref<16x32xbf16, #tpu.memory_space<vmem>>, vector<16x32xbf16>
      tpu.vector_store %arg6[%c0_19, %c0_20], %34 {strides = array<i32>} : memref<16x32xbf16, #tpu.memory_space<vmem>>, vector<16x32xbf16>,
    } else {
    }
    return
  }
  func.func @transform_0(%arg0: i32, %arg1: i32, %arg2: i32) -> (i32, i32) {
    %c0_i32 = arith.constant 0 : i32
    return %arg0, %arg2 : i32, i32
  }
  func.func @transform_1(%arg0: i32, %arg1: i32, %arg2: i32) -> (i32, i32) {
    %c0_i32 = arith.constant 0 : i32
    return %arg2, %arg1 : i32, i32
  }
  func.func @transform_2(%arg0: i32, %arg1: i32, %arg2: i32) -> (i32, i32) {
    %c0_i32 = arith.constant 0 : i32
    %c0_i32_0 = arith.constant 0 : i32
    %c0_i32_1 = arith.constant 0 : i32
    return %c0_i32, %c0_i32_0 : i32, i32
  }
  func.func @transform_3(%arg0: i32, %arg1: i32, %arg2: i32) -> (i32, i32) {
    %c0_i32 = arith.constant 0 : i32
    return %arg0, %arg1 : i32, i32
  }
}

module attributes {stable_mosaic.version = 11 : i64} {
  func.func @_matmul_kernel(%arg0: i32, %arg1: i32, %arg2: i32, %arg3: memref<16x64xbf16, #tpu.memory_space<vmem>>, %arg4: memref<64x64xbf16, #tpu.memory_space<vmem>>, %arg5: memref<16x64xf32, #tpu.memory_space<vmem>>, %arg6: memref<16x64xf32, #tpu.memory_space<vmem>>) attributes {dimension_semantics = [#tpu.dimension_semantics<parallel>, #tpu.dimension_semantics<parallel>, #tpu.dimension_semantics<arbitrary>], iteration_bounds = array<i64: 1, 1, 1>, scalar_prefetch = 0 : i64, scratch_operands = 1 : i64, tpu.core_type = #tpu.core_type<tc>, window_params = [{transform_indices = @transform_0, window_bounds = array<i64: 16, 64>}, {transform_indices = @transform_1, window_bounds = array<i64: 64, 64>}, {transform_indices = @transform_2, window_bounds = array<i64: 16, 64>}]} {
    %c0_i32 = arith.constant 0 : i32
    %0 = arith.cmpi eq, %arg2, %c0_i32 : i32
    %1 = arith.extui %0 : i1 to i32
    %c0_i32_0 = arith.constant 0 : i32
    %2 = arith.cmpi ne, %1, %c0_i32_0 : i32
    scf.if %2 {
      %cst_10 = arith.constant 0.000000e+00 : f32
      %12 = vector.broadcast %cst_10 : f32 to vector<16x64xf32>
      %c0_11 = arith.constant 0 : index
      %c0_12 = arith.constant 0 : index
      %13 = vector.load %arg6[%c0_11, %c0_12] : memref<16x64xf32, #tpu.memory_space<vmem>>, vector<16x64xf32>
      tpu.vector_store %arg6[%c0_11, %c0_12], %12 {strides = array<i32>} : memref<16x64xf32, #tpu.memory_space<vmem>>, vector<16x64xf32>,
    } else {
    }
    %c0 = arith.constant 0 : index
    %c0_1 = arith.constant 0 : index
    %3 = vector.load %arg6[%c0, %c0_1] : memref<16x64xf32, #tpu.memory_space<vmem>>, vector<16x64xf32>
    %c0_2 = arith.constant 0 : index
    %c0_3 = arith.constant 0 : index
    %4 = vector.load %arg3[%c0_2, %c0_3] : memref<16x64xbf16, #tpu.memory_space<vmem>>, vector<16x64xbf16>
    %c0_4 = arith.constant 0 : index
    %c0_5 = arith.constant 0 : index
    %5 = vector.load %arg4[%c0_4, %c0_5] : memref<64x64xbf16, #tpu.memory_space<vmem>>, vector<64x64xbf16>
    %cst = arith.constant dense<0.000000e+00> : vector<16x64xf32>
    %6 = tpu.matmul %4, %5, %cst {dimension_numbers = #tpu.dot_dimension_numbers<[1], [0], [0], [1], [0, 0, 1, 1], [], []>} : vector<16x64xbf16>, vector<64x64xbf16>, vector<16x64xf32> -> vector<16x64xf32>
    %7 = arith.addf %3, %6 : vector<16x64xf32>
    %c0_6 = arith.constant 0 : index
    %c0_7 = arith.constant 0 : index
    %8 = vector.load %arg6[%c0_6, %c0_7] : memref<16x64xf32, #tpu.memory_space<vmem>>, vector<16x64xf32>
    tpu.vector_store %arg6[%c0_6, %c0_7], %7 {strides = array<i32>} : memref<16x64xf32, #tpu.memory_space<vmem>>, vector<16x64xf32>,
    %c0_i32_8 = arith.constant 0 : i32
    %9 = arith.cmpi eq, %arg2, %c0_i32_8 : i32
    %10 = arith.extui %9 : i1 to i32
    %c0_i32_9 = arith.constant 0 : i32
    %11 = arith.cmpi ne, %10, %c0_i32_9 : i32
    scf.if %11 {
      %c0_10 = arith.constant 0 : index
      %c0_11 = arith.constant 0 : index
      %12 = vector.load %arg6[%c0_10, %c0_11] : memref<16x64xf32, #tpu.memory_space<vmem>>, vector<16x64xf32>
      %c0_12 = arith.constant 0 : index
      %c0_13 = arith.constant 0 : index
      %13 = vector.load %arg5[%c0_12, %c0_13] : memref<16x64xf32, #tpu.memory_space<vmem>>, vector<16x64xf32>
      tpu.vector_store %arg5[%c0_12, %c0_13], %12 {strides = array<i32>} : memref<16x64xf32, #tpu.memory_space<vmem>>, vector<16x64xf32>,
    } else {
    }
    return
  }
  func.func @transform_0(%arg0: i32, %arg1: i32, %arg2: i32) -> (i32, i32) {
    %c0_i32 = arith.constant 0 : i32
    return %arg0, %arg2 : i32, i32
  }
  func.func @transform_1(%arg0: i32, %arg1: i32, %arg2: i32) -> (i32, i32) {
    %c0_i32 = arith.constant 0 : i32
    return %arg2, %arg1 : i32, i32
  }
  func.func @transform_2(%arg0: i32, %arg1: i32, %arg2: i32) -> (i32, i32) {
    %c0_i32 = arith.constant 0 : i32
    return %arg0, %arg1 : i32, i32
  }
}

module attributes {stable_mosaic.version = 11 : i64} {
  func.func @_mla_flash_kernel(%arg0: i32, %arg1: i32, %arg2: i32, %arg3: memref<1x8x96xbf16, #tpu.memory_space<vmem>>, %arg4: memref<1x8x128xbf16, #tpu.memory_space<vmem>>, %arg5: memref<1x8x16xbf16, #tpu.memory_space<vmem>>, %arg6: memref<1x8x8xf32, #tpu.memory_space<vmem>>, %arg7: memref<1x8x8xf32, #tpu.memory_space<vmem>>, %arg8: memref<1x8x64xbf16, #tpu.memory_space<vmem>>, %arg9: memref<2x8x1xf32, #tpu.memory_space<vmem>>, %arg10: memref<2x8x1xf32, #tpu.memory_space<vmem>>, %arg11: memref<2x8x32xf32, #tpu.memory_space<vmem>>) attributes {dimension_semantics = [#tpu.dimension_semantics<parallel>, #tpu.dimension_semantics<parallel>, #tpu.dimension_semantics<arbitrary>], iteration_bounds = array<i64: 2, 1, 1>, scalar_prefetch = 0 : i64, scratch_operands = 3 : i64, tpu.core_type = #tpu.core_type<tc>, window_params = [{transform_indices = @transform_0, window_bounds = array<i64: 1, 8, 96>}, {transform_indices = @transform_1, window_bounds = array<i64: 1, 8, 128>}, {transform_indices = @transform_2, window_bounds = array<i64: 1, 8, 16>}, {transform_indices = @transform_3, window_bounds = array<i64: 1, 8, 8>}, {transform_indices = @transform_4, window_bounds = array<i64: 1, 8, 8>}, {transform_indices = @transform_5, window_bounds = array<i64: 1, 8, 64>}]} {
    %c0_i32 = arith.constant 0 : i32
    %0 = arith.cmpi eq, %arg2, %c0_i32 : i32
    %1 = arith.extui %0 : i1 to i32
    %c0_i32_0 = arith.constant 0 : i32
    %2 = arith.cmpi ne, %1, %c0_i32_0 : i32
    scf.if %2 {
      %cst = arith.constant 0xFF800000 : f32
      %12 = vector.broadcast %cst : f32 to vector<2x8x1xf32>
      %c0 = arith.constant 0 : index
      %c0_5 = arith.constant 0 : index
      %c0_6 = arith.constant 0 : index
      %13 = vector.load %arg9[%c0, %c0_5, %c0_6] : memref<2x8x1xf32, #tpu.memory_space<vmem>>, vector<2x8x1xf32>
      tpu.vector_store %arg9[%c0, %c0_5, %c0_6], %12 {strides = array<i32>} : memref<2x8x1xf32, #tpu.memory_space<vmem>>, vector<2x8x1xf32>,
      %cst_7 = arith.constant 0.000000e+00 : f32
      %14 = vector.broadcast %cst_7 : f32 to vector<2x8x1xf32>
      %c0_8 = arith.constant 0 : index
      %c0_9 = arith.constant 0 : index
      %c0_10 = arith.constant 0 : index
      %15 = vector.load %arg10[%c0_8, %c0_9, %c0_10] : memref<2x8x1xf32, #tpu.memory_space<vmem>>, vector<2x8x1xf32>
      tpu.vector_store %arg10[%c0_8, %c0_9, %c0_10], %14 {strides = array<i32>} : memref<2x8x1xf32, #tpu.memory_space<vmem>>, vector<2x8x1xf32>,
      %cst_11 = arith.constant 0.000000e+00 : f32
      %16 = vector.broadcast %cst_11 : f32 to vector<2x8x32xf32>
      %c0_12 = arith.constant 0 : index
      %c0_13 = arith.constant 0 : index
      %c0_14 = arith.constant 0 : index
      %17 = vector.load %arg11[%c0_12, %c0_13, %c0_14] : memref<2x8x32xf32, #tpu.memory_space<vmem>>, vector<2x8x32xf32>
      tpu.vector_store %arg11[%c0_12, %c0_13, %c0_14], %16 {strides = array<i32>} : memref<2x8x32xf32, #tpu.memory_space<vmem>>, vector<2x8x32xf32>,
    } else {
    }
    %c8_i32 = arith.constant 8 : i32
    %3 = arith.muli %arg2, %c8_i32 : i32
    %c1_i32 = arith.constant 1 : i32
    %4 = arith.addi %arg1, %c1_i32 : i32
    %c8_i32_1 = arith.constant 8 : i32
    %5 = arith.muli %4, %c8_i32_1 : i32
    %6 = arith.cmpi slt, %3, %5 : i32
    %7 = arith.extui %6 : i1 to i32
    %c0_i32_2 = arith.constant 0 : i32
    %8 = arith.cmpi ne, %7, %c0_i32_2 : i32
    scf.if %8 {
      %c0 = arith.constant 0 : index
      %c0_5 = arith.constant 0 : index
      %c0_6 = arith.constant 0 : index
      %12 = vector.load %arg3[%c0, %c0_5, %c0_6] : memref<1x8x96xbf16, #tpu.memory_space<vmem>>, vector<1x8x96xbf16>
      %13 = vector.shape_cast %12 : vector<1x8x96xbf16> to vector<8x96xbf16>
      %c0_7 = arith.constant 0 : index
      %c0_8 = arith.constant 0 : index
      %c0_9 = arith.constant 0 : index
      %14 = vector.load %arg4[%c0_7, %c0_8, %c0_9] : memref<1x8x128xbf16, #tpu.memory_space<vmem>>, vector<1x8x128xbf16>
      %15 = vector.shape_cast %14 : vector<1x8x128xbf16> to vector<8x128xbf16>
      %c0_10 = arith.constant 0 : index
      %c0_11 = arith.constant 0 : index
      %c0_12 = arith.constant 0 : index
      %16 = vector.load %arg5[%c0_10, %c0_11, %c0_12] : memref<1x8x16xbf16, #tpu.memory_space<vmem>>, vector<1x8x16xbf16>
      %17 = vector.shape_cast %16 : vector<1x8x16xbf16> to vector<8x16xbf16>
      %c0_13 = arith.constant 0 : index
      %c0_14 = arith.constant 0 : index
      %c0_15 = arith.constant 0 : index
      %18 = vector.load %arg6[%c0_13, %c0_14, %c0_15] : memref<1x8x8xf32, #tpu.memory_space<vmem>>, vector<1x8x8xf32>
      %19 = vector.shape_cast %18 : vector<1x8x8xf32> to vector<8x8xf32>
      %c0_16 = arith.constant 0 : index
      %c0_17 = arith.constant 0 : index
      %c0_18 = arith.constant 0 : index
      %20 = vector.load %arg7[%c0_16, %c0_17, %c0_18] : memref<1x8x8xf32, #tpu.memory_space<vmem>>, vector<1x8x8xf32>
      %21 = vector.shape_cast %20 : vector<1x8x8xf32> to vector<8x8xf32>
      %c8_i32_19 = arith.constant 8 : i32
      %22 = arith.muli %arg1, %c8_i32_19 : i32
      %23 = tpu.iota {dimensions = array<i32: 0>} : vector<8x8xi32>
      %24 = vector.broadcast %22 : i32 to vector<8x8xi32>
      %25 = arith.addi %24, %23 : vector<8x8xi32>
      %c8_i32_20 = arith.constant 8 : i32
      %26 = arith.muli %arg2, %c8_i32_20 : i32
      %27 = tpu.iota {dimensions = array<i32: 1>} : vector<8x8xi32>
      %28 = vector.broadcast %26 : i32 to vector<8x8xi32>
      %29 = arith.addi %28, %27 : vector<8x8xi32>
      %30 = arith.cmpi sle, %29, %25 : vector<8x8xi32>
      %31 = vector.extract_strided_slice %13 {offsets = [0, 0], sizes = [8, 32], strides = [1, 1]} : vector<8x96xbf16> to vector<8x32xbf16>
      %32 = vector.extract_strided_slice %13 {offsets = [0, 64], sizes = [8, 16], strides = [1, 1]} : vector<8x96xbf16> to vector<8x16xbf16>
      %33 = vector.extract_strided_slice %32 {offsets = [0, 0], sizes = [8, 8], strides = [1, 1]} : vector<8x16xbf16> to vector<8x8xbf16>
      %34 = arith.extf %33 : vector<8x8xbf16> to vector<8x8xf32>
      %35 = vector.extract_strided_slice %32 {offsets = [0, 8], sizes = [8, 8], strides = [1, 1]} : vector<8x16xbf16> to vector<8x8xbf16>
      %36 = arith.extf %35 : vector<8x8xbf16> to vector<8x8xf32>
      %37 = arith.mulf %34, %19 : vector<8x8xf32>
      %38 = arith.mulf %36, %21 : vector<8x8xf32>
      %39 = arith.subf %37, %38 : vector<8x8xf32>
      %40 = arith.mulf %36, %19 : vector<8x8xf32>
      %41 = arith.mulf %34, %21 : vector<8x8xf32>
      %42 = arith.addf %40, %41 : vector<8x8xf32>
      %43 = tpu.concatenate %39, %42 in 1 : vector<8x8xf32>, vector<8x8xf32> -> vector<8x16xf32>
      %44 = arith.truncf %43 : vector<8x16xf32> to vector<8x16xbf16>
      %45 = tpu.concatenate %31, %44 in 1 : vector<8x32xbf16>, vector<8x16xbf16> -> vector<8x48xbf16>
      %46 = vector.extract_strided_slice %15 {offsets = [0, 0], sizes = [8, 32], strides = [1, 1]} : vector<8x128xbf16> to vector<8x32xbf16>
      %47 = tpu.concatenate %46, %17 in 1 : vector<8x32xbf16>, vector<8x16xbf16> -> vector<8x48xbf16>
      %48 = vector.extract_strided_slice %15 {offsets = [0, 64], sizes = [8, 32], strides = [1, 1]} : vector<8x128xbf16> to vector<8x32xbf16>
      %cst = arith.constant dense<0.000000e+00> : vector<8x8xf32>
      %49 = tpu.matmul %45, %47, %cst {dimension_numbers = #tpu.dot_dimension_numbers<[1], [1], [0], [0], [0, 0, 1, 0], [], []>} : vector<8x48xbf16>, vector<8x48xbf16>, vector<8x8xf32> -> vector<8x8xf32>
      %cst_21 = arith.constant 0.144337565 : f32
      %50 = vector.broadcast %cst_21 : f32 to vector<8x8xf32>
      %51 = arith.mulf %49, %50 : vector<8x8xf32>
      %cst_22 = arith.constant -1.000000e+30 : f32
      %52 = vector.broadcast %cst_22 : f32 to vector<8x8xf32>
      %53 = arith.select %30, %51, %52 : vector<8x8xi1>, vector<8x8xf32>
      %c0_23 = arith.constant 0 : index
      %c0_24 = arith.constant 0 : index
      %c0_25 = arith.constant 0 : index
      %54 = vector.load %arg9[%c0_23, %c0_24, %c0_25] : memref<2x8x1xf32, #tpu.memory_space<vmem>>, vector<1x8x1xf32>
      %55 = vector.shape_cast %54 : vector<1x8x1xf32> to vector<8x1xf32>
      %cst_26 = arith.constant dense<0xFF800000> : vector<8xf32>
      %56 = vector.multi_reduction <maximumf>, %53, %cst_26 [1] : vector<8x8xf32> to vector<8xf32>
      %57 = vector.shape_cast %56 : vector<8xf32> to vector<8x1xf32>
      %58 = arith.maximumf %55, %57 : vector<8x1xf32>
      %59 = arith.subf %55, %58 : vector<8x1xf32>
      %60 = math.exp %59 : vector<8x1xf32>
      %61 = vector.broadcast %58 : vector<8x1xf32> to vector<8x8xf32>
      %62 = arith.subf %53, %61 : vector<8x8xf32>
      %63 = math.exp %62 : vector<8x8xf32>
      %c0_27 = arith.constant 0 : index
      %c0_28 = arith.constant 0 : index
      %c0_29 = arith.constant 0 : index
      %64 = vector.load %arg10[%c0_27, %c0_28, %c0_29] : memref<2x8x1xf32, #tpu.memory_space<vmem>>, vector<1x8x1xf32>
      %65 = vector.shape_cast %64 : vector<1x8x1xf32> to vector<8x1xf32>
      %66 = arith.mulf %60, %65 : vector<8x1xf32>
      %cst_30 = arith.constant dense<0.000000e+00> : vector<8xf32>
      %67 = vector.multi_reduction <add>, %63, %cst_30 [1] : vector<8x8xf32> to vector<8xf32>
      %68 = vector.shape_cast %67 : vector<8xf32> to vector<8x1xf32>
      %69 = arith.addf %66, %68 : vector<8x1xf32>
      %c0_31 = arith.constant 0 : index
      %c0_32 = arith.constant 0 : index
      %c0_33 = arith.constant 0 : index
      %70 = vector.load %arg10[%c0_31, %c0_32, %c0_33] : memref<2x8x1xf32, #tpu.memory_space<vmem>>, vector<1x8x1xf32>
      %71 = vector.shape_cast %70 : vector<1x8x1xf32> to vector<8x1xf32>
      %72 = vector.shape_cast %69 : vector<8x1xf32> to vector<1x8x1xf32>
      tpu.vector_store %arg10[%c0_31, %c0_32, %c0_33], %72 {strides = array<i32>} : memref<2x8x1xf32, #tpu.memory_space<vmem>>, vector<1x8x1xf32>,
      %c0_34 = arith.constant 0 : index
      %c0_35 = arith.constant 0 : index
      %c0_36 = arith.constant 0 : index
      %73 = vector.load %arg11[%c0_34, %c0_35, %c0_36] : memref<2x8x32xf32, #tpu.memory_space<vmem>>, vector<1x8x32xf32>
      %74 = vector.shape_cast %73 : vector<1x8x32xf32> to vector<8x32xf32>
      %75 = vector.broadcast %60 : vector<8x1xf32> to vector<8x32xf32>
      %76 = arith.mulf %75, %74 : vector<8x32xf32>
      %77 = arith.truncf %63 : vector<8x8xf32> to vector<8x8xbf16>
      %cst_37 = arith.constant dense<0.000000e+00> : vector<8x32xf32>
      %78 = tpu.matmul %77, %48, %cst_37 {dimension_numbers = #tpu.dot_dimension_numbers<[1], [0], [0], [1], [0, 0, 1, 1], [], []>} : vector<8x8xbf16>, vector<8x32xbf16>, vector<8x32xf32> -> vector<8x32xf32>
      %79 = arith.addf %76, %78 : vector<8x32xf32>
      %c0_38 = arith.constant 0 : index
      %c0_39 = arith.constant 0 : index
      %c0_40 = arith.constant 0 : index
      %80 = vector.load %arg11[%c0_38, %c0_39, %c0_40] : memref<2x8x32xf32, #tpu.memory_space<vmem>>, vector<1x8x32xf32>
      %81 = vector.shape_cast %80 : vector<1x8x32xf32> to vector<8x32xf32>
      %82 = vector.shape_cast %79 : vector<8x32xf32> to vector<1x8x32xf32>
      tpu.vector_store %arg11[%c0_38, %c0_39, %c0_40], %82 {strides = array<i32>} : memref<2x8x32xf32, #tpu.memory_space<vmem>>, vector<1x8x32xf32>,
      %c0_41 = arith.constant 0 : index
      %c0_42 = arith.constant 0 : index
      %c0_43 = arith.constant 0 : index
      %83 = vector.load %arg9[%c0_41, %c0_42, %c0_43] : memref<2x8x1xf32, #tpu.memory_space<vmem>>, vector<1x8x1xf32>
      %84 = vector.shape_cast %83 : vector<1x8x1xf32> to vector<8x1xf32>
      %85 = vector.shape_cast %58 : vector<8x1xf32> to vector<1x8x1xf32>
      tpu.vector_store %arg9[%c0_41, %c0_42, %c0_43], %85 {strides = array<i32>} : memref<2x8x1xf32, #tpu.memory_space<vmem>>, vector<1x8x1xf32>,
      %86 = vector.extract_strided_slice %13 {offsets = [0, 32], sizes = [8, 32], strides = [1, 1]} : vector<8x96xbf16> to vector<8x32xbf16>
      %87 = vector.extract_strided_slice %13 {offsets = [0, 80], sizes = [8, 16], strides = [1, 1]} : vector<8x96xbf16> to vector<8x16xbf16>
      %88 = vector.extract_strided_slice %87 {offsets = [0, 0], sizes = [8, 8], strides = [1, 1]} : vector<8x16xbf16> to vector<8x8xbf16>
      %89 = arith.extf %88 : vector<8x8xbf16> to vector<8x8xf32>
      %90 = vector.extract_strided_slice %87 {offsets = [0, 8], sizes = [8, 8], strides = [1, 1]} : vector<8x16xbf16> to vector<8x8xbf16>
      %91 = arith.extf %90 : vector<8x8xbf16> to vector<8x8xf32>
      %92 = arith.mulf %89, %19 : vector<8x8xf32>
      %93 = arith.mulf %91, %21 : vector<8x8xf32>
      %94 = arith.subf %92, %93 : vector<8x8xf32>
      %95 = arith.mulf %91, %19 : vector<8x8xf32>
      %96 = arith.mulf %89, %21 : vector<8x8xf32>
      %97 = arith.addf %95, %96 : vector<8x8xf32>
      %98 = tpu.concatenate %94, %97 in 1 : vector<8x8xf32>, vector<8x8xf32> -> vector<8x16xf32>
      %99 = arith.truncf %98 : vector<8x16xf32> to vector<8x16xbf16>
      %100 = tpu.concatenate %86, %99 in 1 : vector<8x32xbf16>, vector<8x16xbf16> -> vector<8x48xbf16>
      %101 = vector.extract_strided_slice %15 {offsets = [0, 32], sizes = [8, 32], strides = [1, 1]} : vector<8x128xbf16> to vector<8x32xbf16>
      %102 = tpu.concatenate %101, %17 in 1 : vector<8x32xbf16>, vector<8x16xbf16> -> vector<8x48xbf16>
      %103 = vector.extract_strided_slice %15 {offsets = [0, 96], sizes = [8, 32], strides = [1, 1]} : vector<8x128xbf16> to vector<8x32xbf16>
      %cst_44 = arith.constant dense<0.000000e+00> : vector<8x8xf32>
      %104 = tpu.matmul %100, %102, %cst_44 {dimension_numbers = #tpu.dot_dimension_numbers<[1], [1], [0], [0], [0, 0, 1, 0], [], []>} : vector<8x48xbf16>, vector<8x48xbf16>, vector<8x8xf32> -> vector<8x8xf32>
      %cst_45 = arith.constant 0.144337565 : f32
      %105 = vector.broadcast %cst_45 : f32 to vector<8x8xf32>
      %106 = arith.mulf %104, %105 : vector<8x8xf32>
      %cst_46 = arith.constant -1.000000e+30 : f32
      %107 = vector.broadcast %cst_46 : f32 to vector<8x8xf32>
      %108 = arith.select %30, %106, %107 : vector<8x8xi1>, vector<8x8xf32>
      %c1 = arith.constant 1 : index
      %c0_47 = arith.constant 0 : index
      %c0_48 = arith.constant 0 : index
      %109 = vector.load %arg9[%c1, %c0_47, %c0_48] : memref<2x8x1xf32, #tpu.memory_space<vmem>>, vector<1x8x1xf32>
      %110 = vector.shape_cast %109 : vector<1x8x1xf32> to vector<8x1xf32>
      %cst_49 = arith.constant dense<0xFF800000> : vector<8xf32>
      %111 = vector.multi_reduction <maximumf>, %108, %cst_49 [1] : vector<8x8xf32> to vector<8xf32>
      %112 = vector.shape_cast %111 : vector<8xf32> to vector<8x1xf32>
      %113 = arith.maximumf %110, %112 : vector<8x1xf32>
      %114 = arith.subf %110, %113 : vector<8x1xf32>
      %115 = math.exp %114 : vector<8x1xf32>
      %116 = vector.broadcast %113 : vector<8x1xf32> to vector<8x8xf32>
      %117 = arith.subf %108, %116 : vector<8x8xf32>
      %118 = math.exp %117 : vector<8x8xf32>
      %c1_50 = arith.constant 1 : index
      %c0_51 = arith.constant 0 : index
      %c0_52 = arith.constant 0 : index
      %119 = vector.load %arg10[%c1_50, %c0_51, %c0_52] : memref<2x8x1xf32, #tpu.memory_space<vmem>>, vector<1x8x1xf32>
      %120 = vector.shape_cast %119 : vector<1x8x1xf32> to vector<8x1xf32>
      %121 = arith.mulf %115, %120 : vector<8x1xf32>
      %cst_53 = arith.constant dense<0.000000e+00> : vector<8xf32>
      %122 = vector.multi_reduction <add>, %118, %cst_53 [1] : vector<8x8xf32> to vector<8xf32>
      %123 = vector.shape_cast %122 : vector<8xf32> to vector<8x1xf32>
      %124 = arith.addf %121, %123 : vector<8x1xf32>
      %c1_54 = arith.constant 1 : index
      %c0_55 = arith.constant 0 : index
      %c0_56 = arith.constant 0 : index
      %125 = vector.load %arg10[%c1_54, %c0_55, %c0_56] : memref<2x8x1xf32, #tpu.memory_space<vmem>>, vector<1x8x1xf32>
      %126 = vector.shape_cast %125 : vector<1x8x1xf32> to vector<8x1xf32>
      %127 = vector.shape_cast %124 : vector<8x1xf32> to vector<1x8x1xf32>
      tpu.vector_store %arg10[%c1_54, %c0_55, %c0_56], %127 {strides = array<i32>} : memref<2x8x1xf32, #tpu.memory_space<vmem>>, vector<1x8x1xf32>,
      %c1_57 = arith.constant 1 : index
      %c0_58 = arith.constant 0 : index
      %c0_59 = arith.constant 0 : index
      %128 = vector.load %arg11[%c1_57, %c0_58, %c0_59] : memref<2x8x32xf32, #tpu.memory_space<vmem>>, vector<1x8x32xf32>
      %129 = vector.shape_cast %128 : vector<1x8x32xf32> to vector<8x32xf32>
      %130 = vector.broadcast %115 : vector<8x1xf32> to vector<8x32xf32>
      %131 = arith.mulf %130, %129 : vector<8x32xf32>
      %132 = arith.truncf %118 : vector<8x8xf32> to vector<8x8xbf16>
      %cst_60 = arith.constant dense<0.000000e+00> : vector<8x32xf32>
      %133 = tpu.matmul %132, %103, %cst_60 {dimension_numbers = #tpu.dot_dimension_numbers<[1], [0], [0], [1], [0, 0, 1, 1], [], []>} : vector<8x8xbf16>, vector<8x32xbf16>, vector<8x32xf32> -> vector<8x32xf32>
      %134 = arith.addf %131, %133 : vector<8x32xf32>
      %c1_61 = arith.constant 1 : index
      %c0_62 = arith.constant 0 : index
      %c0_63 = arith.constant 0 : index
      %135 = vector.load %arg11[%c1_61, %c0_62, %c0_63] : memref<2x8x32xf32, #tpu.memory_space<vmem>>, vector<1x8x32xf32>
      %136 = vector.shape_cast %135 : vector<1x8x32xf32> to vector<8x32xf32>
      %137 = vector.shape_cast %134 : vector<8x32xf32> to vector<1x8x32xf32>
      tpu.vector_store %arg11[%c1_61, %c0_62, %c0_63], %137 {strides = array<i32>} : memref<2x8x32xf32, #tpu.memory_space<vmem>>, vector<1x8x32xf32>,
      %c1_64 = arith.constant 1 : index
      %c0_65 = arith.constant 0 : index
      %c0_66 = arith.constant 0 : index
      %138 = vector.load %arg9[%c1_64, %c0_65, %c0_66] : memref<2x8x1xf32, #tpu.memory_space<vmem>>, vector<1x8x1xf32>
      %139 = vector.shape_cast %138 : vector<1x8x1xf32> to vector<8x1xf32>
      %140 = vector.shape_cast %113 : vector<8x1xf32> to vector<1x8x1xf32>
      tpu.vector_store %arg9[%c1_64, %c0_65, %c0_66], %140 {strides = array<i32>} : memref<2x8x1xf32, #tpu.memory_space<vmem>>, vector<1x8x1xf32>,
    } else {
    }
    %c0_i32_3 = arith.constant 0 : i32
    %9 = arith.cmpi eq, %arg2, %c0_i32_3 : i32
    %10 = arith.extui %9 : i1 to i32
    %c0_i32_4 = arith.constant 0 : i32
    %11 = arith.cmpi ne, %10, %c0_i32_4 : i32
    scf.if %11 {
      %c0 = arith.constant 0 : index
      %c0_5 = arith.constant 0 : index
      %c0_6 = arith.constant 0 : index
      %12 = vector.load %arg11[%c0, %c0_5, %c0_6] : memref<2x8x32xf32, #tpu.memory_space<vmem>>, vector<1x8x32xf32>
      %13 = vector.shape_cast %12 : vector<1x8x32xf32> to vector<8x32xf32>
      %c0_7 = arith.constant 0 : index
      %c0_8 = arith.constant 0 : index
      %c0_9 = arith.constant 0 : index
      %14 = vector.load %arg10[%c0_7, %c0_8, %c0_9] : memref<2x8x1xf32, #tpu.memory_space<vmem>>, vector<1x8x1xf32>
      %15 = vector.shape_cast %14 : vector<1x8x1xf32> to vector<8x1xf32>
      %16 = tpu.reciprocal %15 {approx = true} : vector<8x1xf32> -> vector<8x1xf32>
      %17 = vector.broadcast %16 : vector<8x1xf32> to vector<8x32xf32>
      %18 = arith.mulf %13, %17 : vector<8x32xf32>
      %c1 = arith.constant 1 : index
      %c0_10 = arith.constant 0 : index
      %c0_11 = arith.constant 0 : index
      %19 = vector.load %arg11[%c1, %c0_10, %c0_11] : memref<2x8x32xf32, #tpu.memory_space<vmem>>, vector<1x8x32xf32>
      %20 = vector.shape_cast %19 : vector<1x8x32xf32> to vector<8x32xf32>
      %c1_12 = arith.constant 1 : index
      %c0_13 = arith.constant 0 : index
      %c0_14 = arith.constant 0 : index
      %21 = vector.load %arg10[%c1_12, %c0_13, %c0_14] : memref<2x8x1xf32, #tpu.memory_space<vmem>>, vector<1x8x1xf32>
      %22 = vector.shape_cast %21 : vector<1x8x1xf32> to vector<8x1xf32>
      %23 = tpu.reciprocal %22 {approx = true} : vector<8x1xf32> -> vector<8x1xf32>
      %24 = vector.broadcast %23 : vector<8x1xf32> to vector<8x32xf32>
      %25 = arith.mulf %20, %24 : vector<8x32xf32>
      %26 = tpu.concatenate %18, %25 in 1 : vector<8x32xf32>, vector<8x32xf32> -> vector<8x64xf32>
      %27 = arith.truncf %26 : vector<8x64xf32> to vector<8x64xbf16>
      %c0_15 = arith.constant 0 : index
      %c0_16 = arith.constant 0 : index
      %c0_17 = arith.constant 0 : index
      %28 = vector.load %arg8[%c0_15, %c0_16, %c0_17] : memref<1x8x64xbf16, #tpu.memory_space<vmem>>, vector<1x8x64xbf16>
      %29 = vector.shape_cast %28 : vector<1x8x64xbf16> to vector<8x64xbf16>
      %30 = vector.shape_cast %27 : vector<8x64xbf16> to vector<1x8x64xbf16>
      tpu.vector_store %arg8[%c0_15, %c0_16, %c0_17], %30 {strides = array<i32>} : memref<1x8x64xbf16, #tpu.memory_space<vmem>>, vector<1x8x64xbf16>,
    } else {
    }
    return
  }
  func.func @transform_0(%arg0: i32, %arg1: i32, %arg2: i32) -> (i32, i32, i32) {
    %c0_i32 = arith.constant 0 : i32
    %c0_i32_0 = arith.constant 0 : i32
    return %arg0, %arg1, %c0_i32 : i32, i32, i32
  }
  func.func @transform_1(%arg0: i32, %arg1: i32, %arg2: i32) -> (i32, i32, i32) {
    %c0_i32 = arith.constant 0 : i32
    %c0_i32_0 = arith.constant 0 : i32
    return %arg0, %arg2, %c0_i32 : i32, i32, i32
  }
  func.func @transform_2(%arg0: i32, %arg1: i32, %arg2: i32) -> (i32, i32, i32) {
    %c0_i32 = arith.constant 0 : i32
    %c0_i32_0 = arith.constant 0 : i32
    return %arg0, %arg2, %c0_i32 : i32, i32, i32
  }
  func.func @transform_3(%arg0: i32, %arg1: i32, %arg2: i32) -> (i32, i32, i32) {
    %c0_i32 = arith.constant 0 : i32
    %c0_i32_0 = arith.constant 0 : i32
    return %arg0, %arg1, %c0_i32 : i32, i32, i32
  }
  func.func @transform_4(%arg0: i32, %arg1: i32, %arg2: i32) -> (i32, i32, i32) {
    %c0_i32 = arith.constant 0 : i32
    %c0_i32_0 = arith.constant 0 : i32
    return %arg0, %arg1, %c0_i32 : i32, i32, i32
  }
  func.func @transform_5(%arg0: i32, %arg1: i32, %arg2: i32) -> (i32, i32, i32) {
    %c0_i32 = arith.constant 0 : i32
    %c0_i32_0 = arith.constant 0 : i32
    return %arg0, %arg1, %c0_i32 : i32, i32, i32
  }
}

</mosaic_0001>

<llo_original>
// kernel: prefill_attn_forward.7
$region0: #{prefill_attn_forward.7}
  #allocation0 [shape = 'u32[]', space=smem, size = 0x4, offset = 0x4, fixed_abs, tag = 'smem constant byte address 0x4 - core index']
  #allocation1 [shape = 'u32[144,128]{1,0:T(1,128)}', space=vmem, size = 0x12000, scoped, tag = 'internal scratch']
  #allocation2 [shape = 'f32[16,96]{1,0:T(8,128)}', space=vmem, size = 0x2000, scoped, tag = 'scratch operand']
  %s0 = inlined_call_operand.vmem [shape: bf16[16,32], index: 0, kind: input, shape index: {}]
  %s1 = inlined_call_operand.vmem [shape: bf16[32,96], index: 1, kind: input, shape index: {}]
  %s2 = inlined_call_operand.vmem [shape: bf16[16,96], index: 2, kind: output, shape index: {}]
  %s3 = sld [smem:[#allocation0]]
  $region26: #{prefill_attn_forward.7} parent=0
    _
  %s5 = ssub.s32 1, %s3
  %s6 = scalar_select 0, %s5, %s3
  // Predicated region
  $region2: #{prefill_attn_forward.7} parent=0 // pred_check
    _
  $region3: #{prefill_attn_forward.7} parent=0 // pred_check_branch
    %8 = sbr.rel (0) target = $region5
  $region4: #{prefill_attn_forward.7} parent=0 // pred_region
    _
  $region5: #{prefill_attn_forward.7} parent=0 // pred_fallthru
    _
  // Predicated region
  $region6: #{prefill_attn_forward.7} parent=0 // pred_check
    _
  $region7: #{prefill_attn_forward.7} parent=0 // pred_check_branch
    %10 = sbr.rel (0) target = $region9
  $region8: #{prefill_attn_forward.7} parent=0 // pred_region
    _
  $region9: #{prefill_attn_forward.7} parent=0 // pred_fallthru
    _
  %p12 = scmp.eq.s32.totalorder 0, 0
  // Predicated region
  $region10: #{prefill_attn_forward.7} parent=0 // pred_check
    %p13 = pneg %p12
  $region11: #{prefill_attn_forward.7} parent=0 // pred_check_branch
    %15 = sbr.rel (%p13) target = $region13
  $region12: #{prefill_attn_forward.7} parent=0 // pred_region
    %vm16 = vcmask 785408
    %17 = vst.msk [vmem:[#allocation2] sm:$0xff] %vm16, 0.0
    %18 = vst.msk [vmem:[#allocation2 + $0x8] sm:$0xff] %vm16, 0.0
  $region13: #{prefill_attn_forward.7} parent=0 // pred_fallthru
    _
  %v19 = vld [vmem:[#allocation2] sm:$0xff]
  %v20 = vld [vmem:[#allocation2 + $0x8] sm:$0xff]
  %v21 = vld [vmem:[%s0] sm:$0xf]
  %v22 = vld [vmem:[%s0 + $0x4] sm:$0xf]
  %v23 = vld [vmem:[%s1] sm:$0xf]
  %v24 = vld [vmem:[%s1 + $0x4] sm:$0xf]
  %v25 = vld [vmem:[%s1 + $0x8] sm:$0xf]
  %v26 = vld [vmem:[%s1 + $0xc] sm:$0xf]
  %v29 = vunpack.c.l.b16 %v21
  %v30 = vunpack.c.l.b16 %v22
  %v31 = vpack.c.b16 %v30, %v29
  %v36 = vunpack.c.l.b16 %v23
  %v37 = vunpack.c.l.b16 %v24
  %v38 = vunpack.c.l.b16 %v25
  %v39 = vunpack.c.l.b16 %v26
  %v40 = vpack.c.b16 %v37, %v36
  %v41 = vpack.c.b16 %v39, %v38
  %vm44 = vcmask 261120
  %v46 = vsel %vm44, %v31, 0
  %48 = vmatprep.subr.bf16.mxu0 0
  %49 = vmatpush1.bf16.msra.mxu0 %v40
  %50 = vmatprep.subr.bf16.mxu0 0
  %51 = vmatpush1.bf16.msra.mxu0 %v41
  %52 = vmatprep.subr.bf16.mxu0 0
  %53 = vmatpush1.bf16.msra.mxu0 0
  %54 = vmatprep.subr.bf16.mxu0 0
  %55 = vmatpush1.bf16.msra.mxu0 0
  %56 = vmatprep.subr.bf16.mxu0 0
  %57 = vmatpush1.bf16.msra.mxu0 0
  %58 = vmatprep.subr.bf16.mxu0 0
  %59 = vmatpush1.bf16.msra.mxu0 0
  %60 = vmatprep.subr.bf16.mxu0 0
  %61 = vmatpush1.bf16.msra.mxu0 0
  %62 = vmatprep.subr.bf16.mxu0 0
  %63 = vmatpush1.bf16.msra.mxu0 0
  %64 = vmatprep.subr.bf16.mxu0 0
  %65 = vmatpush1.bf16.msra.mxu0 0
  %66 = vmatprep.subr.bf16.mxu0 0
  %67 = vmatpush1.bf16.msra.mxu0 0
  %68 = vmatprep.subr.bf16.mxu0 0
  %69 = vmatpush1.bf16.msra.mxu0 0
  %70 = vmatprep.subr.bf16.mxu0 0
  %71 = vmatpush1.bf16.msra.mxu0 0
  %72 = vmatprep.subr.bf16.mxu0 0
  %73 = vmatpush1.bf16.msra.mxu0 0
  %74 = vmatprep.subr.bf16.mxu0 0
  %75 = vmatpush1.bf16.msra.mxu0 0
  %76 = vmatprep.subr.bf16.mxu0 0
  %77 = vmatpush1.bf16.msra.mxu0 0
  %78 = vmatprep.subr.bf16.mxu0 0
  %79 = vmatpush1.bf16.msra.mxu0 0
  %80 = vmatprep.mubr.bf16.mxu0 0
  %81 = vmatmul.mubr.bf16.gmra.mrb[0].mxu0 %v46
  %v82 = vpop.f32.mrb[0].mxu0
  %v83 = vadd.f32 0.0, %v82
  %v84 = vpop.f32.mrb[0].mxu0
  %v85 = vpop.f32.mrb[0].mxu0
  %v86 = vadd.f32 0.0, %v85
  %v87 = vpop.f32.mrb[0].mxu0
  %88 = vdwg.mxu0
  %v89 = vadd.f32 %v19, %v83
  %v90 = vadd.f32 %v20, %v86
  %vm91 = vcmask 785408
  %92 = vst.msk [vmem:[#allocation2] sm:$0xff] %vm91, %v89
  %93 = vst.msk [vmem:[#allocation2 + $0x8] sm:$0xff] %vm91, %v90
  // Predicated region
  $region14: #{prefill_attn_forward.7} parent=0 // pred_check
    %p94 = pneg %p12
  $region15: #{prefill_attn_forward.7} parent=0 // pred_check_branch
    %96 = sbr.rel (%p94) target = $region17
  $region16: #{prefill_attn_forward.7} parent=0 // pred_region
    %v97 = vld [vmem:[#allocation2] sm:$0xff]
    %v98 = vld [vmem:[#allocation2 + $0x8] sm:$0xff]
    %v99 = vpack.c.bf16 %v98, %v97
    %v101 = vunpack.c.l.b16 %v99
    %v102 = vunpack.c.h.b16 %v99
    %v103 = vpack.c.b16 %v101, %v101
    %v104 = vpack.c.b16 %v102, %v102
    %vm107 = vcmask 781312
    %108 = vst.msk [vmem:[%s2] sm:$0xf] %vm107, %v103
    %109 = vst.msk [vmem:[%s2 + $0x4] sm:$0xf] %vm107, %v104
  $region17: #{prefill_attn_forward.7} parent=0 // pred_fallthru
    _
  // Predicated region
  $region18: #{prefill_attn_forward.7} parent=0 // pred_check
    _
  $region19: #{prefill_attn_forward.7} parent=0 // pred_check_branch
    %111 = sbr.rel (0) target = $region21
  $region20: #{prefill_attn_forward.7} parent=0 // pred_region
    _
  $region21: #{prefill_attn_forward.7} parent=0 // pred_fallthru
    _
  // Predicated region
  $region22: #{prefill_attn_forward.7} parent=0 // pred_check
    _
  $region23: #{prefill_attn_forward.7} parent=0 // pred_check_branch
    %113 = sbr.rel (0) target = $region25
  $region24: #{prefill_attn_forward.7} parent=0 // pred_region
    _
  $region25: #{prefill_attn_forward.7} parent=0 // pred_fallthru
    _

// kernel: prefill_attn_forward.9
$region0: #{prefill_attn_forward.9}
  #allocation0 [shape = 'u32[]', space=smem, size = 0x4, offset = 0x4, fixed_abs, tag = 'smem constant byte address 0x4 - core index']
  #allocation1 [shape = 'u32[144,128]{1,0:T(1,128)}', space=vmem, size = 0x12000, scoped, tag = 'internal scratch']
  #allocation2 [shape = 'f32[16,128]{1,0:T(8,128)}', space=vmem, size = 0x2000, scoped, tag = 'scratch operand']
  %s0 = inlined_call_operand.vmem [shape: bf16[16,32], index: 0, kind: input, shape index: {}]
  %s1 = inlined_call_operand.vmem [shape: bf16[32,128], index: 1, kind: input, shape index: {}]
  %s2 = inlined_call_operand.vmem [shape: bf16[16,128], index: 2, kind: output, shape index: {}]
  %s3 = sld [smem:[#allocation0]]
  $region26: #{prefill_attn_forward.9} parent=0
    _
  %s5 = ssub.s32 1, %s3
  %s6 = scalar_select 0, %s5, %s3
  // Predicated region
  $region2: #{prefill_attn_forward.9} parent=0 // pred_check
    _
  $region3: #{prefill_attn_forward.9} parent=0 // pred_check_branch
    %8 = sbr.rel (0) target = $region5
  $region4: #{prefill_attn_forward.9} parent=0 // pred_region
    _
  $region5: #{prefill_attn_forward.9} parent=0 // pred_fallthru
    _
  // Predicated region
  $region6: #{prefill_attn_forward.9} parent=0 // pred_check
    _
  $region7: #{prefill_attn_forward.9} parent=0 // pred_check_branch
    %10 = sbr.rel (0) target = $region9
  $region8: #{prefill_attn_forward.9} parent=0 // pred_region
    _
  $region9: #{prefill_attn_forward.9} parent=0 // pred_fallthru
    _
  %p12 = scmp.eq.s32.totalorder 0, 0
  // Predicated region
  $region10: #{prefill_attn_forward.9} parent=0 // pred_check
    %p13 = pneg %p12
  $region11: #{prefill_attn_forward.9} parent=0 // pred_check_branch
    %15 = sbr.rel (%p13) target = $region13
  $region12: #{prefill_attn_forward.9} parent=0 // pred_region
    %16 = vst [vmem:[#allocation2] sm:$0xff] 0.0
    %17 = vst [vmem:[#allocation2 + $0x8] sm:$0xff] 0.0
  $region13: #{prefill_attn_forward.9} parent=0 // pred_fallthru
    _
  %v18 = vld [vmem:[#allocation2] sm:$0xff]
  %v19 = vld [vmem:[#allocation2 + $0x8] sm:$0xff]
  %v20 = vld [vmem:[%s0] sm:$0xf]
  %v21 = vld [vmem:[%s0 + $0x4] sm:$0xf]
  %v22 = vld [vmem:[%s1] sm:$0xf]
  %v23 = vld [vmem:[%s1 + $0x4] sm:$0xf]
  %v24 = vld [vmem:[%s1 + $0x8] sm:$0xf]
  %v25 = vld [vmem:[%s1 + $0xc] sm:$0xf]
  %v28 = vunpack.c.l.b16 %v20
  %v29 = vunpack.c.l.b16 %v21
  %v30 = vpack.c.b16 %v29, %v28
  %v35 = vunpack.c.l.b16 %v22
  %v36 = vunpack.c.l.b16 %v23
  %v37 = vunpack.c.l.b16 %v24
  %v38 = vunpack.c.l.b16 %v25
  %v39 = vpack.c.b16 %v36, %v35
  %v40 = vpack.c.b16 %v38, %v37
  %vm43 = vcmask 261120
  %v45 = vsel %vm43, %v30, 0
  %47 = vmatprep.subr.bf16.mxu0 0
  %48 = vmatpush1.bf16.msra.mxu0 %v39
  %49 = vmatprep.subr.bf16.mxu0 0
  %50 = vmatpush1.bf16.msra.mxu0 %v40
  %51 = vmatprep.subr.bf16.mxu0 0
  %52 = vmatpush1.bf16.msra.mxu0 0
  %53 = vmatprep.subr.bf16.mxu0 0
  %54 = vmatpush1.bf16.msra.mxu0 0
  %55 = vmatprep.subr.bf16.mxu0 0
  %56 = vmatpush1.bf16.msra.mxu0 0
  %57 = vmatprep.subr.bf16.mxu0 0
  %58 = vmatpush1.bf16.msra.mxu0 0
  %59 = vmatprep.subr.bf16.mxu0 0
  %60 = vmatpush1.bf16.msra.mxu0 0
  %61 = vmatprep.subr.bf16.mxu0 0
  %62 = vmatpush1.bf16.msra.mxu0 0
  %63 = vmatprep.subr.bf16.mxu0 0
  %64 = vmatpush1.bf16.msra.mxu0 0
  %65 = vmatprep.subr.bf16.mxu0 0
  %66 = vmatpush1.bf16.msra.mxu0 0
  %67 = vmatprep.subr.bf16.mxu0 0
  %68 = vmatpush1.bf16.msra.mxu0 0
  %69 = vmatprep.subr.bf16.mxu0 0
  %70 = vmatpush1.bf16.msra.mxu0 0
  %71 = vmatprep.subr.bf16.mxu0 0
  %72 = vmatpush1.bf16.msra.mxu0 0
  %73 = vmatprep.subr.bf16.mxu0 0
  %74 = vmatpush1.bf16.msra.mxu0 0
  %75 = vmatprep.subr.bf16.mxu0 0
  %76 = vmatpush1.bf16.msra.mxu0 0
  %77 = vmatprep.subr.bf16.mxu0 0
  %78 = vmatpush1.bf16.msra.mxu0 0
  %79 = vmatprep.mubr.bf16.mxu0 0
  %80 = vmatmul.mubr.bf16.gmra.mrb[0].mxu0 %v45
  %v81 = vpop.f32.mrb[0].mxu0
  %v82 = vadd.f32 0.0, %v81
  %v83 = vpop.f32.mrb[0].mxu0
  %v84 = vpop.f32.mrb[0].mxu0
  %v85 = vadd.f32 0.0, %v84
  %v86 = vpop.f32.mrb[0].mxu0
  %87 = vdwg.mxu0
  %v88 = vadd.f32 %v18, %v82
  %v89 = vadd.f32 %v19, %v85
  %90 = vst [vmem:[#allocation2] sm:$0xff] %v88
  %91 = vst [vmem:[#allocation2 + $0x8] sm:$0xff] %v89
  // Predicated region
  $region14: #{prefill_attn_forward.9} parent=0 // pred_check
    %p92 = pneg %p12
  $region15: #{prefill_attn_forward.9} parent=0 // pred_check_branch
    %94 = sbr.rel (%p92) target = $region17
  $region16: #{prefill_attn_forward.9} parent=0 // pred_region
    %v95 = vld [vmem:[#allocation2] sm:$0xff]
    %v96 = vld [vmem:[#allocation2 + $0x8] sm:$0xff]
    %v97 = vpack.c.bf16 %v96, %v95
    %v99 = vunpack.c.l.b16 %v97
    %v100 = vunpack.c.h.b16 %v97
    %v101 = vpack.c.b16 %v99, %v99
    %v102 = vpack.c.b16 %v100, %v100
    %105 = vst [vmem:[%s2] sm:$0xf] %v101
    %106 = vst [vmem:[%s2 + $0x4] sm:$0xf] %v102
  $region17: #{prefill_attn_forward.9} parent=0 // pred_fallthru
    _
  // Predicated region
  $region18: #{prefill_attn_forward.9} parent=0 // pred_check
    _
  $region19: #{prefill_attn_forward.9} parent=0 // pred_check_branch
    %108 = sbr.rel (0) target = $region21
  $region20: #{prefill_attn_forward.9} parent=0 // pred_region
    _
  $region21: #{prefill_attn_forward.9} parent=0 // pred_fallthru
    _
  // Predicated region
  $region22: #{prefill_attn_forward.9} parent=0 // pred_check
    _
  $region23: #{prefill_attn_forward.9} parent=0 // pred_check_branch
    %110 = sbr.rel (0) target = $region25
  $region24: #{prefill_attn_forward.9} parent=0 // pred_region
    _
  $region25: #{prefill_attn_forward.9} parent=0 // pred_fallthru
    _

// kernel: prefill_attn_forward.8
$region0: #{prefill_attn_forward.8}
  #allocation0 [shape = 'u32[]', space=smem, size = 0x4, offset = 0x4, fixed_abs, tag = 'smem constant byte address 0x4 - core index']
  #allocation1 [shape = 'u32[144,128]{1,0:T(1,128)}', space=vmem, size = 0x12000, scoped, tag = 'internal scratch']
  #allocation2 [shape = 'f32[16,48]{1,0:T(8,128)}', space=vmem, size = 0x2000, scoped, tag = 'scratch operand']
  %s0 = inlined_call_operand.vmem [shape: bf16[16,64], index: 0, kind: input, shape index: {}]
  %s1 = inlined_call_operand.vmem [shape: bf16[64,48], index: 1, kind: input, shape index: {}]
  %s2 = inlined_call_operand.vmem [shape: f32[1,48], index: 2, kind: input, shape index: {}]
  %s3 = inlined_call_operand.vmem [shape: bf16[16,48], index: 3, kind: output, shape index: {}]
  %s4 = sld [smem:[#allocation0]]
  $region30: #{prefill_attn_forward.8} parent=0
    _
  %s6 = ssub.s32 1, %s4
  %s7 = scalar_select 0, %s6, %s4
  // Predicated region
  $region2: #{prefill_attn_forward.8} parent=0 // pred_check
    _
  $region3: #{prefill_attn_forward.8} parent=0 // pred_check_branch
    %9 = sbr.rel (0) target = $region5
  $region4: #{prefill_attn_forward.8} parent=0 // pred_region
    _
  $region5: #{prefill_attn_forward.8} parent=0 // pred_fallthru
    _
  // Predicated region
  $region6: #{prefill_attn_forward.8} parent=0 // pred_check
    _
  $region7: #{prefill_attn_forward.8} parent=0 // pred_check_branch
    %11 = sbr.rel (0) target = $region9
  $region8: #{prefill_attn_forward.8} parent=0 // pred_region
    _
  $region9: #{prefill_attn_forward.8} parent=0 // pred_fallthru
    _
  // Predicated region
  $region10: #{prefill_attn_forward.8} parent=0 // pred_check
    _
  $region11: #{prefill_attn_forward.8} parent=0 // pred_check_branch
    %13 = sbr.rel (0) target = $region13
  $region12: #{prefill_attn_forward.8} parent=0 // pred_region
    _
  $region13: #{prefill_attn_forward.8} parent=0 // pred_fallthru
    _
  %p15 = scmp.eq.s32.totalorder 0, 0
  // Predicated region
  $region14: #{prefill_attn_forward.8} parent=0 // pred_check
    %p16 = pneg %p15
  $region15: #{prefill_attn_forward.8} parent=0 // pred_check_branch
    %18 = sbr.rel (%p16) target = $region17
  $region16: #{prefill_attn_forward.8} parent=0 // pred_region
    %vm19 = vcmask 392192
    %20 = vst.msk [vmem:[#allocation2] sm:$0xff] %vm19, 0.0
    %21 = vst.msk [vmem:[#allocation2 + $0x8] sm:$0xff] %vm19, 0.0
  $region17: #{prefill_attn_forward.8} parent=0 // pred_fallthru
    _
  %v22 = vld [vmem:[#allocation2] sm:$0xff]
  %v23 = vld [vmem:[#allocation2 + $0x8] sm:$0xff]
  %v24 = vld [vmem:[%s0] sm:$0xf]
  %v25 = vld [vmem:[%s0 + $0x4] sm:$0xf]
  %v26 = vld [vmem:[%s1] sm:$0xf]
  %v27 = vld [vmem:[%s1 + $0x4] sm:$0xf]
  %v28 = vld [vmem:[%s1 + $0x8] sm:$0xf]
  %v29 = vld [vmem:[%s1 + $0xc] sm:$0xf]
  %v30 = vld [vmem:[%s1 + $0x10] sm:$0xf]
  %v31 = vld [vmem:[%s1 + $0x14] sm:$0xf]
  %v32 = vld [vmem:[%s1 + $0x18] sm:$0xf]
  %v33 = vld [vmem:[%s1 + $0x1c] sm:$0xf]
  %v36 = vunpack.c.l.b16 %v24
  %v37 = vunpack.c.l.b16 %v25
  %v38 = vpack.c.b16 %v37, %v36
  %v47 = vunpack.c.l.b16 %v26
  %v48 = vunpack.c.l.b16 %v27
  %v49 = vunpack.c.l.b16 %v28
  %v50 = vunpack.c.l.b16 %v29
  %v51 = vunpack.c.l.b16 %v30
  %v52 = vunpack.c.l.b16 %v31
  %v53 = vunpack.c.l.b16 %v32
  %v54 = vunpack.c.l.b16 %v33
  %v55 = vpack.c.b16 %v48, %v47
  %v56 = vpack.c.b16 %v50, %v49
  %v57 = vpack.c.b16 %v52, %v51
  %v58 = vpack.c.b16 %v54, %v53
  %vm63 = vcmask 523264
  %v65 = vsel %vm63, %v38, 0
  %67 = vmatprep.subr.bf16.mxu0 0
  %68 = vmatpush1.bf16.msra.mxu0 %v55
  %69 = vmatprep.subr.bf16.mxu0 0
  %70 = vmatpush1.bf16.msra.mxu0 %v56
  %71 = vmatprep.subr.bf16.mxu0 0
  %72 = vmatpush1.bf16.msra.mxu0 %v57
  %73 = vmatprep.subr.bf16.mxu0 0
  %74 = vmatpush1.bf16.msra.mxu0 %v58
  %75 = vmatprep.subr.bf16.mxu0 0
  %76 = vmatpush1.bf16.msra.mxu0 0
  %77 = vmatprep.subr.bf16.mxu0 0
  %78 = vmatpush1.bf16.msra.mxu0 0
  %79 = vmatprep.subr.bf16.mxu0 0
  %80 = vmatpush1.bf16.msra.mxu0 0
  %81 = vmatprep.subr.bf16.mxu0 0
  %82 = vmatpush1.bf16.msra.mxu0 0
  %83 = vmatprep.subr.bf16.mxu0 0
  %84 = vmatpush1.bf16.msra.mxu0 0
  %85 = vmatprep.subr.bf16.mxu0 0
  %86 = vmatpush1.bf16.msra.mxu0 0
  %87 = vmatprep.subr.bf16.mxu0 0
  %88 = vmatpush1.bf16.msra.mxu0 0
  %89 = vmatprep.subr.bf16.mxu0 0
  %90 = vmatpush1.bf16.msra.mxu0 0
  %91 = vmatprep.subr.bf16.mxu0 0
  %92 = vmatpush1.bf16.msra.mxu0 0
  %93 = vmatprep.subr.bf16.mxu0 0
  %94 = vmatpush1.bf16.msra.mxu0 0
  %95 = vmatprep.subr.bf16.mxu0 0
  %96 = vmatpush1.bf16.msra.mxu0 0
  %97 = vmatprep.subr.bf16.mxu0 0
  %98 = vmatpush1.bf16.msra.mxu0 0
  %99 = vmatprep.mubr.bf16.mxu0 0
  %100 = vmatmul.mubr.bf16.gmra.mrb[0].mxu0 %v65
  %v101 = vpop.f32.mrb[0].mxu0
  %v102 = vadd.f32 0.0, %v101
  %v103 = vpop.f32.mrb[0].mxu0
  %v104 = vpop.f32.mrb[0].mxu0
  %v105 = vadd.f32 0.0, %v104
  %v106 = vpop.f32.mrb[0].mxu0
  %107 = vdwg.mxu0
  %v108 = vadd.f32 %v22, %v102
  %v109 = vadd.f32 %v23, %v105
  %vm110 = vcmask 392192
  %111 = vst.msk [vmem:[#allocation2] sm:$0xff] %vm110, %v108
  %112 = vst.msk [vmem:[#allocation2 + $0x8] sm:$0xff] %vm110, %v109
  // Predicated region
  $region18: #{prefill_attn_forward.8} parent=0 // pred_check
    %p113 = pneg %p15
  $region19: #{prefill_attn_forward.8} parent=0 // pred_check_branch
    %115 = sbr.rel (%p113) target = $region21
  $region20: #{prefill_attn_forward.8} parent=0 // pred_region
    %v116 = vld [vmem:[#allocation2] sm:$0xff]
    %v117 = vld [vmem:[#allocation2 + $0x8] sm:$0xff]
    %v118 = vlaneseq
    %v119 = vand.u32 %v118, 127
    %vm120 = vcmp.lt.s32.totalorder %v119, 32
    %v121 = vmul.f32 %v116, %v116
    %v122 = vmul.f32 %v117, %v117
    %v123 = vsel %vm120, %v121, 0.0
    %v124 = vsel %vm120, %v122, 0.0
    %v125 = vsel %vm110, %v123, 0.0
    %126 = vadd.xlane.f32.xlu0 %v125
    %v127 = vpop.xlane.xlu0 %126
    %v128 = vsel %vm110, %v124, 0.0
    %129 = vadd.xlane.f32.xlu0 %v128
    %v130 = vpop.xlane.xlu0 %129
    %v131 = vrcp.pop 32.0
    %v132 = vmul.f32 %v127, %v131
    %v133 = vmul.f32 %v130, %v131
    %v134 = vadd.f32 %v132, 1e-06
    %v135 = vadd.f32 %v133, 1e-06
    %v136 = vrsqrt.pop %v134
    %v137 = vrsqrt.pop %v135
    %v138 = vsel %vm120, %v136, 1.0
    %v139 = vsel %vm120, %v137, 1.0
    %v140 = vmul.f32 %v116, %v138
    %v141 = vmul.f32 %v117, %v139
    %v142 = vld [vmem:[%s2] sm:$0x1]
    %v144 = vlaneseq
    %v145 = vshrl.u32 %v144, 7
    %v146 = vsub.s32 0, %v145
    %v147 = vrot.slane %v142, %v146
    %v149 = vmul.f32 %v140, %v147
    %v150 = vmul.f32 %v141, %v147
    %v151 = vpack.c.bf16 %v150, %v149
    %v153 = vunpack.c.l.b16 %v151
    %v154 = vunpack.c.h.b16 %v151
    %v155 = vpack.c.b16 %v153, %v153
    %v156 = vpack.c.b16 %v154, %v154
    %vm159 = vcmask 388096
    %160 = vst.msk [vmem:[%s3] sm:$0xf] %vm159, %v155
    %161 = vst.msk [vmem:[%s3 + $0x4] sm:$0xf] %vm159, %v156
  $region21: #{prefill_attn_forward.8} parent=0 // pred_fallthru
    _
  // Predicated region
  $region22: #{prefill_attn_forward.8} parent=0 // pred_check
    _
  $region23: #{prefill_attn_forward.8} parent=0 // pred_check_branch
    %163 = sbr.rel (0) target = $region25
  $region24: #{prefill_attn_forward.8} parent=0 // pred_region
    _
  $region25: #{prefill_attn_forward.8} parent=0 // pred_fallthru
    _
  // Predicated region
  $region26: #{prefill_attn_forward.8} parent=0 // pred_check
    _
  $region27: #{prefill_attn_forward.8} parent=0 // pred_check_branch
    %165 = sbr.rel (0) target = $region29
  $region28: #{prefill_attn_forward.8} parent=0 // pred_region
    _
  $region29: #{prefill_attn_forward.8} parent=0 // pred_fallthru
    _

// kernel: prefill_attn_forward.6
$region0: #{prefill_attn_forward.6}
  #allocation0 [shape = 'u32[]', space=smem, size = 0x4, offset = 0x4, fixed_abs, tag = 'smem constant byte address 0x4 - core index']
  #allocation1 [shape = 'u32[144,128]{1,0:T(1,128)}', space=vmem, size = 0x12000, scoped, tag = 'internal scratch']
  #allocation2 [shape = 'f32[16,32]{1,0:T(8,128)}', space=vmem, size = 0x2000, scoped, tag = 'scratch operand']
  %s0 = inlined_call_operand.vmem [shape: bf16[16,64], index: 0, kind: input, shape index: {}]
  %s1 = inlined_call_operand.vmem [shape: bf16[64,32], index: 1, kind: input, shape index: {}]
  %s2 = inlined_call_operand.vmem [shape: f32[1,32], index: 2, kind: input, shape index: {}]
  %s3 = inlined_call_operand.vmem [shape: bf16[16,32], index: 3, kind: output, shape index: {}]
  %s4 = sld [smem:[#allocation0]]
  $region30: #{prefill_attn_forward.6} parent=0
    _
  %s6 = ssub.s32 1, %s4
  %s7 = scalar_select 0, %s6, %s4
  // Predicated region
  $region2: #{prefill_attn_forward.6} parent=0 // pred_check
    _
  $region3: #{prefill_attn_forward.6} parent=0 // pred_check_branch
    %9 = sbr.rel (0) target = $region5
  $region4: #{prefill_attn_forward.6} parent=0 // pred_region
    _
  $region5: #{prefill_attn_forward.6} parent=0 // pred_fallthru
    _
  // Predicated region
  $region6: #{prefill_attn_forward.6} parent=0 // pred_check
    _
  $region7: #{prefill_attn_forward.6} parent=0 // pred_check_branch
    %11 = sbr.rel (0) target = $region9
  $region8: #{prefill_attn_forward.6} parent=0 // pred_region
    _
  $region9: #{prefill_attn_forward.6} parent=0 // pred_fallthru
    _
  // Predicated region
  $region10: #{prefill_attn_forward.6} parent=0 // pred_check
    _
  $region11: #{prefill_attn_forward.6} parent=0 // pred_check_branch
    %13 = sbr.rel (0) target = $region13
  $region12: #{prefill_attn_forward.6} parent=0 // pred_region
    _
  $region13: #{prefill_attn_forward.6} parent=0 // pred_fallthru
    _
  %p15 = scmp.eq.s32.totalorder 0, 0
  // Predicated region
  $region14: #{prefill_attn_forward.6} parent=0 // pred_check
    %p16 = pneg %p15
  $region15: #{prefill_attn_forward.6} parent=0 // pred_check_branch
    %18 = sbr.rel (%p16) target = $region17
  $region16: #{prefill_attn_forward.6} parent=0 // pred_region
    %vm19 = vcmask 261120
    %20 = vst.msk [vmem:[#allocation2] sm:$0xff] %vm19, 0.0
    %21 = vst.msk [vmem:[#allocation2 + $0x8] sm:$0xff] %vm19, 0.0
  $region17: #{prefill_attn_forward.6} parent=0 // pred_fallthru
    _
  %v22 = vld [vmem:[#allocation2] sm:$0xff]
  %v23 = vld [vmem:[#allocation2 + $0x8] sm:$0xff]
  %v24 = vld [vmem:[%s0] sm:$0xf]
  %v25 = vld [vmem:[%s0 + $0x4] sm:$0xf]
  %v26 = vld [vmem:[%s1] sm:$0xf]
  %v27 = vld [vmem:[%s1 + $0x4] sm:$0xf]
  %v28 = vld [vmem:[%s1 + $0x8] sm:$0xf]
  %v29 = vld [vmem:[%s1 + $0xc] sm:$0xf]
  %v30 = vld [vmem:[%s1 + $0x10] sm:$0xf]
  %v31 = vld [vmem:[%s1 + $0x14] sm:$0xf]
  %v32 = vld [vmem:[%s1 + $0x18] sm:$0xf]
  %v33 = vld [vmem:[%s1 + $0x1c] sm:$0xf]
  %v36 = vunpack.c.l.b16 %v24
  %v37 = vunpack.c.l.b16 %v25
  %v38 = vpack.c.b16 %v37, %v36
  %v47 = vunpack.c.l.b16 %v26
  %v48 = vunpack.c.l.b16 %v27
  %v49 = vunpack.c.l.b16 %v28
  %v50 = vunpack.c.l.b16 %v29
  %v51 = vunpack.c.l.b16 %v30
  %v52 = vunpack.c.l.b16 %v31
  %v53 = vunpack.c.l.b16 %v32
  %v54 = vunpack.c.l.b16 %v33
  %v55 = vpack.c.b16 %v48, %v47
  %v56 = vpack.c.b16 %v50, %v49
  %v57 = vpack.c.b16 %v52, %v51
  %v58 = vpack.c.b16 %v54, %v53
  %vm63 = vcmask 523264
  %v65 = vsel %vm63, %v38, 0
  %67 = vmatprep.subr.bf16.mxu0 0
  %68 = vmatpush1.bf16.msra.mxu0 %v55
  %69 = vmatprep.subr.bf16.mxu0 0
  %70 = vmatpush1.bf16.msra.mxu0 %v56
  %71 = vmatprep.subr.bf16.mxu0 0
  %72 = vmatpush1.bf16.msra.mxu0 %v57
  %73 = vmatprep.subr.bf16.mxu0 0
  %74 = vmatpush1.bf16.msra.mxu0 %v58
  %75 = vmatprep.subr.bf16.mxu0 0
  %76 = vmatpush1.bf16.msra.mxu0 0
  %77 = vmatprep.subr.bf16.mxu0 0
  %78 = vmatpush1.bf16.msra.mxu0 0
  %79 = vmatprep.subr.bf16.mxu0 0
  %80 = vmatpush1.bf16.msra.mxu0 0
  %81 = vmatprep.subr.bf16.mxu0 0
  %82 = vmatpush1.bf16.msra.mxu0 0
  %83 = vmatprep.subr.bf16.mxu0 0
  %84 = vmatpush1.bf16.msra.mxu0 0
  %85 = vmatprep.subr.bf16.mxu0 0
  %86 = vmatpush1.bf16.msra.mxu0 0
  %87 = vmatprep.subr.bf16.mxu0 0
  %88 = vmatpush1.bf16.msra.mxu0 0
  %89 = vmatprep.subr.bf16.mxu0 0
  %90 = vmatpush1.bf16.msra.mxu0 0
  %91 = vmatprep.subr.bf16.mxu0 0
  %92 = vmatpush1.bf16.msra.mxu0 0
  %93 = vmatprep.subr.bf16.mxu0 0
  %94 = vmatpush1.bf16.msra.mxu0 0
  %95 = vmatprep.subr.bf16.mxu0 0
  %96 = vmatpush1.bf16.msra.mxu0 0
  %97 = vmatprep.subr.bf16.mxu0 0
  %98 = vmatpush1.bf16.msra.mxu0 0
  %99 = vmatprep.mubr.bf16.mxu0 0
  %100 = vmatmul.mubr.bf16.gmra.mrb[0].mxu0 %v65
  %v101 = vpop.f32.mrb[0].mxu0
  %v102 = vadd.f32 0.0, %v101
  %v103 = vpop.f32.mrb[0].mxu0
  %v104 = vpop.f32.mrb[0].mxu0
  %v105 = vadd.f32 0.0, %v104
  %v106 = vpop.f32.mrb[0].mxu0
  %107 = vdwg.mxu0
  %v108 = vadd.f32 %v22, %v102
  %v109 = vadd.f32 %v23, %v105
  %vm110 = vcmask 261120
  %111 = vst.msk [vmem:[#allocation2] sm:$0xff] %vm110, %v108
  %112 = vst.msk [vmem:[#allocation2 + $0x8] sm:$0xff] %vm110, %v109
  // Predicated region
  $region18: #{prefill_attn_forward.6} parent=0 // pred_check
    %p113 = pneg %p15
  $region19: #{prefill_attn_forward.6} parent=0 // pred_check_branch
    %115 = sbr.rel (%p113) target = $region21
  $region20: #{prefill_attn_forward.6} parent=0 // pred_region
    %v116 = vld [vmem:[#allocation2] sm:$0xff]
    %v117 = vld [vmem:[#allocation2 + $0x8] sm:$0xff]
    %v118 = vlaneseq
    %v119 = vand.u32 %v118, 127
    %vm120 = vcmp.lt.s32.totalorder %v119, 32
    %v121 = vmul.f32 %v116, %v116
    %v122 = vmul.f32 %v117, %v117
    %v123 = vsel %vm120, %v121, 0.0
    %v124 = vsel %vm120, %v122, 0.0
    %v125 = vsel %vm110, %v123, 0.0
    %126 = vadd.xlane.f32.xlu0 %v125
    %v127 = vpop.xlane.xlu0 %126
    %v128 = vsel %vm110, %v124, 0.0
    %129 = vadd.xlane.f32.xlu0 %v128
    %v130 = vpop.xlane.xlu0 %129
    %v131 = vrcp.pop 32.0
    %v132 = vmul.f32 %v127, %v131
    %v133 = vmul.f32 %v130, %v131
    %v134 = vadd.f32 %v132, 1e-06
    %v135 = vadd.f32 %v133, 1e-06
    %v136 = vrsqrt.pop %v134
    %v137 = vrsqrt.pop %v135
    %v138 = vsel %vm120, %v136, 1.0
    %v139 = vsel %vm120, %v137, 1.0
    %v140 = vmul.f32 %v116, %v138
    %v141 = vmul.f32 %v117, %v139
    %v142 = vld [vmem:[%s2] sm:$0x1]
    %v144 = vlaneseq
    %v145 = vshrl.u32 %v144, 7
    %v146 = vsub.s32 0, %v145
    %v147 = vrot.slane %v142, %v146
    %v149 = vmul.f32 %v140, %v147
    %v150 = vmul.f32 %v141, %v147
    %v151 = vpack.c.bf16 %v150, %v149
    %v153 = vunpack.c.l.b16 %v151
    %v154 = vunpack.c.h.b16 %v151
    %v155 = vpack.c.b16 %v153, %v153
    %v156 = vpack.c.b16 %v154, %v154
    %vm159 = vcmask 257024
    %160 = vst.msk [vmem:[%s3] sm:$0xf] %vm159, %v155
    %161 = vst.msk [vmem:[%s3 + $0x4] sm:$0xf] %vm159, %v156
  $region21: #{prefill_attn_forward.6} parent=0 // pred_fallthru
    _
  // Predicated region
  $region22: #{prefill_attn_forward.6} parent=0 // pred_check
    _
  $region23: #{prefill_attn_forward.6} parent=0 // pred_check_branch
    %163 = sbr.rel (0) target = $region25
  $region24: #{prefill_attn_forward.6} parent=0 // pred_region
    _
  $region25: #{prefill_attn_forward.6} parent=0 // pred_fallthru
    _
  // Predicated region
  $region26: #{prefill_attn_forward.6} parent=0 // pred_check
    _
  $region27: #{prefill_attn_forward.6} parent=0 // pred_check_branch
    %165 = sbr.rel (0) target = $region29
  $region28: #{prefill_attn_forward.6} parent=0 // pred_region
    _
  $region29: #{prefill_attn_forward.6} parent=0 // pred_fallthru
    _

// kernel: prefill_attn_forward.11
$region0: #{prefill_attn_forward.11}
  #allocation0 [shape = 'u32[]', space=smem, size = 0x4, offset = 0x4, fixed_abs, tag = 'smem constant byte address 0x4 - core index']
  #allocation1 [shape = 'u32[144,128]{1,0:T(1,128)}', space=vmem, size = 0x12000, scoped, tag = 'internal scratch']
  #allocation2 [shape = 'f32[16,64]{1,0:T(8,128)}', space=vmem, size = 0x2000, scoped, tag = 'scratch operand']
  %s0 = inlined_call_operand.vmem [shape: bf16[16,64], index: 0, kind: input, shape index: {}]
  %s1 = inlined_call_operand.vmem [shape: bf16[64,64], index: 1, kind: input, shape index: {}]
  %s2 = inlined_call_operand.hbm [shape: f32[16,64], index: 2, kind: output, shape index: {}]
  %s3 = sld [smem:[#allocation0]]
  $region26: #{prefill_attn_forward.11} parent=0
    _
  %s5 = ssub.s32 1, %s3
  %s6 = scalar_select 0, %s5, %s3
  $region1: #{prefill_attn_forward.11} parent=0
    #allocation3 [shape = 'u8[8192]{0}', space=vmem, size = 0x2000, scoped, tag = 'output window, operand 0, single buffered']
    #allocation4 [shape = 's32[1]{0}', space=sflag, size = 0x4, scoped, tag = 'scoped memory for prefill_attn_forward.11']
    %7 = vsyncpa [#allocation4], 0
    // Predicated region
    $region2: #{prefill_attn_forward.11} parent=1 // pred_check
      _
    $region3: #{prefill_attn_forward.11} parent=1 // pred_check_branch
      %9 = sbr.rel (0) target = $region5
    $region4: #{prefill_attn_forward.11} parent=1 // pred_region
      _
    $region5: #{prefill_attn_forward.11} parent=1 // pred_fallthru
      _
    // Predicated region
    $region6: #{prefill_attn_forward.11} parent=1 // pred_check
      _
    $region7: #{prefill_attn_forward.11} parent=1 // pred_check_branch
      %11 = sbr.rel (0) target = $region9
    $region8: #{prefill_attn_forward.11} parent=1 // pred_region
      _
    $region9: #{prefill_attn_forward.11} parent=1 // pred_fallthru
      _
    %p13 = scmp.eq.s32.totalorder 0, 0
    // Predicated region
    $region10: #{prefill_attn_forward.11} parent=1 // pred_check
      %p14 = pneg %p13
    $region11: #{prefill_attn_forward.11} parent=1 // pred_check_branch
      %16 = sbr.rel (%p14) target = $region13
    $region12: #{prefill_attn_forward.11} parent=1 // pred_region
      %vm17 = vcmask 523264
      %18 = vst.msk [vmem:[#allocation2] sm:$0xff] %vm17, 0.0
      %19 = vst.msk [vmem:[#allocation2 + $0x8] sm:$0xff] %vm17, 0.0
    $region13: #{prefill_attn_forward.11} parent=1 // pred_fallthru
      _
    %v20 = vld [vmem:[#allocation2] sm:$0xff]
    %v21 = vld [vmem:[#allocation2 + $0x8] sm:$0xff]
    %v22 = vld [vmem:[%s0] sm:$0xf]
    %v23 = vld [vmem:[%s0 + $0x4] sm:$0xf]
    %v24 = vld [vmem:[%s1] sm:$0xf]
    %v25 = vld [vmem:[%s1 + $0x4] sm:$0xf]
    %v26 = vld [vmem:[%s1 + $0x8] sm:$0xf]
    %v27 = vld [vmem:[%s1 + $0xc] sm:$0xf]
    %v28 = vld [vmem:[%s1 + $0x10] sm:$0xf]
    %v29 = vld [vmem:[%s1 + $0x14] sm:$0xf]
    %v30 = vld [vmem:[%s1 + $0x18] sm:$0xf]
    %v31 = vld [vmem:[%s1 + $0x1c] sm:$0xf]
    %v34 = vunpack.c.l.b16 %v22
    %v35 = vunpack.c.l.b16 %v23
    %v36 = vpack.c.b16 %v35, %v34
    %v45 = vunpack.c.l.b16 %v24
    %v46 = vunpack.c.l.b16 %v25
    %v47 = vunpack.c.l.b16 %v26
    %v48 = vunpack.c.l.b16 %v27
    %v49 = vunpack.c.l.b16 %v28
    %v50 = vunpack.c.l.b16 %v29
    %v51 = vunpack.c.l.b16 %v30
    %v52 = vunpack.c.l.b16 %v31
    %v53 = vpack.c.b16 %v46, %v45
    %v54 = vpack.c.b16 %v48, %v47
    %v55 = vpack.c.b16 %v50, %v49
    %v56 = vpack.c.b16 %v52, %v51
    %vm61 = vcmask 523264
    %v63 = vsel %vm61, %v36, 0
    %65 = vmatprep.subr.bf16.mxu0 0
    %66 = vmatpush1.bf16.msra.mxu0 %v53
    %67 = vmatprep.subr.bf16.mxu0 0
    %68 = vmatpush1.bf16.msra.mxu0 %v54
    %69 = vmatprep.subr.bf16.mxu0 0
    %70 = vmatpush1.bf16.msra.mxu0 %v55
    %71 = vmatprep.subr.bf16.mxu0 0
    %72 = vmatpush1.bf16.msra.mxu0 %v56
    %73 = vmatprep.subr.bf16.mxu0 0
    %74 = vmatpush1.bf16.msra.mxu0 0
    %75 = vmatprep.subr.bf16.mxu0 0
    %76 = vmatpush1.bf16.msra.mxu0 0
    %77 = vmatprep.subr.bf16.mxu0 0
    %78 = vmatpush1.bf16.msra.mxu0 0
    %79 = vmatprep.subr.bf16.mxu0 0
    %80 = vmatpush1.bf16.msra.mxu0 0
    %81 = vmatprep.subr.bf16.mxu0 0
    %82 = vmatpush1.bf16.msra.mxu0 0
    %83 = vmatprep.subr.bf16.mxu0 0
    %84 = vmatpush1.bf16.msra.mxu0 0
    %85 = vmatprep.subr.bf16.mxu0 0
    %86 = vmatpush1.bf16.msra.mxu0 0
    %87 = vmatprep.subr.bf16.mxu0 0
    %88 = vmatpush1.bf16.msra.mxu0 0
    %89 = vmatprep.subr.bf16.mxu0 0
    %90 = vmatpush1.bf16.msra.mxu0 0
    %91 = vmatprep.subr.bf16.mxu0 0
    %92 = vmatpush1.bf16.msra.mxu0 0
    %93 = vmatprep.subr.bf16.mxu0 0
    %94 = vmatpush1.bf16.msra.mxu0 0
    %95 = vmatprep.subr.bf16.mxu0 0
    %96 = vmatpush1.bf16.msra.mxu0 0
    %97 = vmatprep.mubr.bf16.mxu0 0
    %98 = vmatmul.mubr.bf16.gmra.mrb[0].mxu0 %v63
    %v99 = vpop.f32.mrb[0].mxu0
    %v100 = vadd.f32 0.0, %v99
    %v101 = vpop.f32.mrb[0].mxu0
    %v102 = vpop.f32.mrb[0].mxu0
    %v103 = vadd.f32 0.0, %v102
    %v104 = vpop.f32.mrb[0].mxu0
    %105 = vdwg.mxu0
    %v106 = vadd.f32 %v20, %v100
    %v107 = vadd.f32 %v21, %v103
    %108 = vst.msk [vmem:[#allocation2] sm:$0xff] %vm61, %v106
    %109 = vst.msk [vmem:[#allocation2 + $0x8] sm:$0xff] %vm61, %v107
    // Predicated region
    $region14: #{prefill_attn_forward.11} parent=1 // pred_check
      %p110 = pneg %p13
    $region15: #{prefill_attn_forward.11} parent=1 // pred_check_branch
      %112 = sbr.rel (%p110) target = $region17
    $region16: #{prefill_attn_forward.11} parent=1 // pred_region
      %v113 = vld [vmem:[#allocation2] sm:$0xff]
      %v114 = vld [vmem:[#allocation2 + $0x8] sm:$0xff]
      %115 = vst.msk [vmem:[#allocation3] sm:$0xff] %vm61, %v113
      %116 = vst.msk [vmem:[#allocation3 + $0x8] sm:$0xff] %vm61, %v114
    $region17: #{prefill_attn_forward.11} parent=1 // pred_fallthru
      _
    // Predicated region
    $region18: #{prefill_attn_forward.11} parent=1 // pred_check
      _
    $region19: #{prefill_attn_forward.11} parent=1 // pred_check_branch
      %118 = sbr.rel (0) target = $region21
    $region20: #{prefill_attn_forward.11} parent=1 // pred_region
      %s120 = ssub.s32 256, 256
      %121 = vsyncadd [#allocation4], %s120
      %s122 = sshll.u32 [#allocation3], 4
      %s123 = int_to_ptr.vmem [resolvable:$true] %s122
      %128 = dma.vmem_to_hbm [thread:$0]  %s123, 256, %s2, [#allocation4], 128, 128, 8
    $region21: #{prefill_attn_forward.11} parent=1 // pred_fallthru
      _
    // Predicated region
    $region22: #{prefill_attn_forward.11} parent=1 // pred_check
      _
    $region23: #{prefill_attn_forward.11} parent=1 // pred_check_branch
      %130 = sbr.rel (0) target = $region25
    $region24: #{prefill_attn_forward.11} parent=1 // pred_region
      %131 = dma.done [#allocation4], 256
    $region25: #{prefill_attn_forward.11} parent=1 // pred_fallthru
      _
    %132 = vsyncpa [#allocation4], 1

// kernel: prefill_attn_forward.10
$region0: #{prefill_attn_forward.10}
  #allocation0 [shape = 'u32[]', space=smem, size = 0x4, offset = 0x4, fixed_abs, tag = 'smem constant byte address 0x4 - core index']
  #allocation1 [shape = 'u32[144,128]{1,0:T(1,128)}', space=vmem, size = 0x12000, scoped, tag = 'internal scratch']
  #allocation2 [shape = 'f32[2,8,1]{2,1,0:T(8,128)}', space=vmem, size = 0x2000, scoped, tag = 'scratch operand']
  #allocation3 [shape = 'f32[2,8,1]{2,1,0:T(8,128)}', space=vmem, size = 0x2000, scoped, tag = 'scratch operand']
  #allocation4 [shape = 'f32[2,8,32]{2,1,0:T(8,128)}', space=vmem, size = 0x2000, scoped, tag = 'scratch operand']
  %s0 = inlined_call_operand.vmem [shape: bf16[2,8,96], index: 0, kind: input, shape index: {}]
  %s1 = inlined_call_operand.vmem [shape: bf16[2,8,128], index: 1, kind: input, shape index: {}]
  %s2 = inlined_call_operand.vmem [shape: bf16[2,8,16], index: 2, kind: input, shape index: {}]
  %s3 = inlined_call_operand.vmem [shape: f32[2,8,8], index: 3, kind: input, shape index: {}]
  %s4 = inlined_call_operand.vmem [shape: f32[2,8,8], index: 4, kind: input, shape index: {}]
  %s5 = inlined_call_operand.vmem [shape: bf16[2,8,64], index: 5, kind: output, shape index: {}]
  %s6 = sld [smem:[#allocation0]]
  $region65: #{prefill_attn_forward.10} parent=0
    _
  %s8 = ssub.s32 1, %s6
  %s9 = scalar_select 0, %s8, %s6
  loop: start=0, step=1, limit=4
  $region2: #{prefill_attn_forward.10} parent=0 // loop_pre_header
    _
  $region3: #{prefill_attn_forward.10} parent=0 // loop_header
    %s11 = sphi 0, %s15
    %p12 = scmp.ge.s32.totalorder %s11, 4
    %s18 = sphi 0, %s37
    %s19 = sphi 0, %s33
    %s20 = sphi 0, %s29
    %s21 = sphi 0, %s18
    %s22 = sphi 0, %s19
    %s23 = sphi 0, %s20
    %s24 = sphi 0, %s21
    %s25 = sphi 0, %s22
    %s26 = sphi 0, %s23
    %s42 = sphi 0, %s44
    %s45 = sphi 0, %s42
    %s46 = sphi 0, %s45
    %s62 = sphi 0, %s46
    %s70 = sphi 0, %s72
    %s73 = sphi 0, %s70
    %s74 = sphi 0, %s73
    %s90 = sphi 0, %s74
    %s98 = sphi 0, %s100
    %s101 = sphi 0, %s98
    %s102 = sphi 0, %s101
    %s118 = sphi 0, %s102
    %s126 = sphi 0, %s128
    %s129 = sphi 0, %s126
    %s130 = sphi 0, %s129
    %s146 = sphi 0, %s130
    %s154 = sphi 0, %s156
    %s157 = sphi 0, %s154
    %s158 = sphi 0, %s157
    %s174 = sphi 0, %s158
    %s182 = sphi 0, %s184
    %s185 = sphi 0, %s182
    %s186 = sphi 0, %s185
    %s202 = sphi 0, %s186
  $region4: #{prefill_attn_forward.10} parent=0 // loop_header_branch
    %14 = sbr.rel (%p12) target = $region8
  $region5: #{prefill_attn_forward.10} parent=0 // loop_body
    %s16 = ssub.s32 %s11, 1
    %s17 = ssub.s32 %s11, 2
    %s27 = sadd.s32 1, %s20
    %p28 = scmp.ge.s32.totalorder %s27, 1
    %s29 = scalar_select %p28, 0, %s27
    %s30 = sadd.s32 1, %s19
    %s31 = scalar_select %p28, %s30, %s19
    %p32 = scmp.ge.s32.totalorder %s31, 1
    %s33 = scalar_select %p32, 0, %s31
    %s34 = sadd.s32 1, %s18
    %s35 = scalar_select %p32, %s34, %s18
    %p36 = scmp.ge.s32.totalorder %s35, 2
    %s37 = scalar_select %p36, 0, %s35
    %s38 = ssub.s32 %s18, %s37
    %s39 = ssub.s32 %s19, %s33
    %s40 = sor.u32 %s38, %s39
    %p41 = scmp.eq.s32.totalorder %s40, 0
    %s43 = sadd.s32 %s42, 1
    %s44 = scalar_select %p41, %s42, %s43
    %p47 = pneg %p41
    %p48 = scmp.eq.s32.totalorder %s11, 1
    %p49 = por %p47, %p48
    %p50 = scmp.ne.s32.totalorder %s42, %s45
    %p51 = scmp.eq.s32.totalorder %s11, 0
    %p52 = por %p50, %p51
    %p53 = scmp.ne.s32.totalorder %s42, %s45
    %p54 = scmp.eq.s32.totalorder %s16, 1
    %p55 = por %p53, %p54
    %p56 = scmp.ne.s32.totalorder %s45, %s46
    %p57 = scmp.eq.s32.totalorder %s16, 0
    %p58 = por %p56, %p57
    %p59 = scmp.ne.s32.totalorder %s45, %s46
    %p60 = scmp.eq.s32.totalorder %s17, 1
    %p61 = por %p59, %p60
    %p63 = scmp.ne.s32.totalorder %s46, %s62
    %p64 = scmp.eq.s32.totalorder %s17, 0
    %p65 = por %p63, %p64
    %s66 = ssub.s32 %s18, %s37
    %s67 = ssub.s32 %s20, %s29
    %s68 = sor.u32 %s66, %s67
    %p69 = scmp.eq.s32.totalorder %s68, 0
    %s71 = sadd.s32 %s70, 1
    %s72 = scalar_select %p69, %s70, %s71
    %p75 = pneg %p69
    %p76 = scmp.eq.s32.totalorder %s11, 1
    %p77 = por %p75, %p76
    %p78 = scmp.ne.s32.totalorder %s70, %s73
    %p79 = scmp.eq.s32.totalorder %s11, 0
    %p80 = por %p78, %p79
    %p81 = scmp.ne.s32.totalorder %s70, %s73
    %p82 = scmp.eq.s32.totalorder %s16, 1
    %p83 = por %p81, %p82
    %p84 = scmp.ne.s32.totalorder %s73, %s74
    %p85 = scmp.eq.s32.totalorder %s16, 0
    %p86 = por %p84, %p85
    %p87 = scmp.ne.s32.totalorder %s73, %s74
    %p88 = scmp.eq.s32.totalorder %s17, 1
    %p89 = por %p87, %p88
    %p91 = scmp.ne.s32.totalorder %s74, %s90
    %p92 = scmp.eq.s32.totalorder %s17, 0
    %p93 = por %p91, %p92
    %s94 = ssub.s32 %s18, %s37
    %s95 = ssub.s32 %s20, %s29
    %s96 = sor.u32 %s94, %s95
    %p97 = scmp.eq.s32.totalorder %s96, 0
    %s99 = sadd.s32 %s98, 1
    %s100 = scalar_select %p97, %s98, %s99
    %p103 = pneg %p97
    %p104 = scmp.eq.s32.totalorder %s11, 1
    %p105 = por %p103, %p104
    %p106 = scmp.ne.s32.totalorder %s98, %s101
    %p107 = scmp.eq.s32.totalorder %s11, 0
    %p108 = por %p106, %p107
    %p109 = scmp.ne.s32.totalorder %s98, %s101
    %p110 = scmp.eq.s32.totalorder %s16, 1
    %p111 = por %p109, %p110
    %p112 = scmp.ne.s32.totalorder %s101, %s102
    %p113 = scmp.eq.s32.totalorder %s16, 0
    %p114 = por %p112, %p113
    %p115 = scmp.ne.s32.totalorder %s101, %s102
    %p116 = scmp.eq.s32.totalorder %s17, 1
    %p117 = por %p115, %p116
    %p119 = scmp.ne.s32.totalorder %s102, %s118
    %p120 = scmp.eq.s32.totalorder %s17, 0
    %p121 = por %p119, %p120
    %s122 = ssub.s32 %s18, %s37
    %s123 = ssub.s32 %s19, %s33
    %s124 = sor.u32 %s122, %s123
    %p125 = scmp.eq.s32.totalorder %s124, 0
    %s127 = sadd.s32 %s126, 1
    %s128 = scalar_select %p125, %s126, %s127
    %p131 = pneg %p125
    %p132 = scmp.eq.s32.totalorder %s11, 1
    %p133 = por %p131, %p132
    %p134 = scmp.ne.s32.totalorder %s126, %s129
    %p135 = scmp.eq.s32.totalorder %s11, 0
    %p136 = por %p134, %p135
    %p137 = scmp.ne.s32.totalorder %s126, %s129
    %p138 = scmp.eq.s32.totalorder %s16, 1
    %p139 = por %p137, %p138
    %p140 = scmp.ne.s32.totalorder %s129, %s130
    %p141 = scmp.eq.s32.totalorder %s16, 0
    %p142 = por %p140, %p141
    %p143 = scmp.ne.s32.totalorder %s129, %s130
    %p144 = scmp.eq.s32.totalorder %s17, 1
    %p145 = por %p143, %p144
    %p147 = scmp.ne.s32.totalorder %s130, %s146
    %p148 = scmp.eq.s32.totalorder %s17, 0
    %p149 = por %p147, %p148
    %s150 = ssub.s32 %s18, %s37
    %s151 = ssub.s32 %s19, %s33
    %s152 = sor.u32 %s150, %s151
    %p153 = scmp.eq.s32.totalorder %s152, 0
    %s155 = sadd.s32 %s154, 1
    %s156 = scalar_select %p153, %s154, %s155
    %p159 = pneg %p153
    %p160 = scmp.eq.s32.totalorder %s11, 1
    %p161 = por %p159, %p160
    %p162 = scmp.ne.s32.totalorder %s154, %s157
    %p163 = scmp.eq.s32.totalorder %s11, 0
    %p164 = por %p162, %p163
    %p165 = scmp.ne.s32.totalorder %s154, %s157
    %p166 = scmp.eq.s32.totalorder %s16, 1
    %p167 = por %p165, %p166
    %p168 = scmp.ne.s32.totalorder %s157, %s158
    %p169 = scmp.eq.s32.totalorder %s16, 0
    %p170 = por %p168, %p169
    %p171 = scmp.ne.s32.totalorder %s157, %s158
    %p172 = scmp.eq.s32.totalorder %s17, 1
    %p173 = por %p171, %p172
    %p175 = scmp.ne.s32.totalorder %s158, %s174
    %p176 = scmp.eq.s32.totalorder %s17, 0
    %p177 = por %p175, %p176
    %s178 = ssub.s32 %s18, %s37
    %s179 = ssub.s32 %s19, %s33
    %s180 = sor.u32 %s178, %s179
    %p181 = scmp.eq.s32.totalorder %s180, 0
    %s183 = sadd.s32 %s182, 1
    %s184 = scalar_select %p181, %s182, %s183
    %p187 = pneg %p181
    %p188 = scmp.eq.s32.totalorder %s11, 1
    %p189 = por %p187, %p188
    %p190 = scmp.ne.s32.totalorder %s182, %s185
    %p191 = scmp.eq.s32.totalorder %s11, 0
    %p192 = por %p190, %p191
    %p193 = scmp.ne.s32.totalorder %s182, %s185
    %p194 = scmp.eq.s32.totalorder %s16, 1
    %p195 = por %p193, %p194
    %p196 = scmp.ne.s32.totalorder %s185, %s186
    %p197 = scmp.eq.s32.totalorder %s16, 0
    %p198 = por %p196, %p197
    %p199 = scmp.ne.s32.totalorder %s185, %s186
    %p200 = scmp.eq.s32.totalorder %s17, 1
    %p201 = por %p199, %p200
    %p203 = scmp.ne.s32.totalorder %s186, %s202
    %p204 = scmp.eq.s32.totalorder %s17, 0
    %p205 = por %p203, %p204
    %p206 = scmp.le.s32.totalorder 1, %s11
    %p207 = scmp.lt.s32.totalorder %s11, 3
    %p208 = pnand %p206, %p207
    %p209 = pneg %p208
    // Predicated region
    $region9: #{prefill_attn_forward.10} parent=5 // pred_check
      _
    $region10: #{prefill_attn_forward.10} parent=5 // pred_check_branch
      %211 = sbr.rel (%p208) target = $region12
    $region11: #{prefill_attn_forward.10} parent=5 // pred_region
      %s212 = ssub.s32 %s11, 1
    $region12: #{prefill_attn_forward.10} parent=5 // pred_fallthru
      _
    %p213 = scmp.lt.s32.totalorder %s11, 2
    // Predicated region
    $region13: #{prefill_attn_forward.10} parent=5 // pred_check
      %p214 = pneg %p213
    $region14: #{prefill_attn_forward.10} parent=5 // pred_check_branch
      %216 = sbr.rel (%p214) target = $region16
    $region15: #{prefill_attn_forward.10} parent=5 // pred_region
      // Predicated region
      $region17: #{prefill_attn_forward.10} parent=15 // pred_check
        %p217 = pneg %p52
      $region18: #{prefill_attn_forward.10} parent=15 // pred_check_branch
        %219 = sbr.rel (%p217) target = $region20
      $region19: #{prefill_attn_forward.10} parent=15 // pred_region
        %p220 = scmp.lt.s32.totalorder %s18, 1
        %s221 = scalar_select %p220, %s18, 1
        %p222 = scmp.lt.s32.totalorder %s19, 0
        %s223 = scalar_select %p222, %s19, 0
        %s224 = sadd.s32 %s223, %s221
        %s225 = smul.addr %s224, 4
        %s226 = scalar_lea.vmem %s0, %s225
      $region20: #{prefill_attn_forward.10} parent=15 // pred_fallthru
        _
      // Predicated region
      $region21: #{prefill_attn_forward.10} parent=15 // pred_check
        %p227 = pneg %p80
      $region22: #{prefill_attn_forward.10} parent=15 // pred_check_branch
        %229 = sbr.rel (%p227) target = $region24
      $region23: #{prefill_attn_forward.10} parent=15 // pred_region
        %p230 = scmp.lt.s32.totalorder %s18, 1
        %s231 = scalar_select %p230, %s18, 1
        %p232 = scmp.lt.s32.totalorder %s20, 0
        %s233 = scalar_select %p232, %s20, 0
        %s234 = sadd.s32 %s233, %s231
        %s235 = smul.addr %s234, 4
        %s236 = scalar_lea.vmem %s1, %s235
      $region24: #{prefill_attn_forward.10} parent=15 // pred_fallthru
        _
      // Predicated region
      $region25: #{prefill_attn_forward.10} parent=15 // pred_check
        %p237 = pneg %p108
      $region26: #{prefill_attn_forward.10} parent=15 // pred_check_branch
        %239 = sbr.rel (%p237) target = $region28
      $region27: #{prefill_attn_forward.10} parent=15 // pred_region
        %p240 = scmp.lt.s32.totalorder %s18, 1
        %s241 = scalar_select %p240, %s18, 1
        %p242 = scmp.lt.s32.totalorder %s20, 0
        %s243 = scalar_select %p242, %s20, 0
        %s244 = sadd.s32 %s243, %s241
        %s245 = smul.addr %s244, 4
        %s246 = scalar_lea.vmem %s2, %s245
      $region28: #{prefill_attn_forward.10} parent=15 // pred_fallthru
        _
      // Predicated region
      $region29: #{prefill_attn_forward.10} parent=15 // pred_check
        %p247 = pneg %p136
      $region30: #{prefill_attn_forward.10} parent=15 // pred_check_branch
        %249 = sbr.rel (%p247) target = $region32
      $region31: #{prefill_attn_forward.10} parent=15 // pred_region
        %p250 = scmp.lt.s32.totalorder %s18, 1
        %s251 = scalar_select %p250, %s18, 1
        %p252 = scmp.lt.s32.totalorder %s19, 0
        %s253 = scalar_select %p252, %s19, 0
        %s254 = sadd.s32 %s253, %s251
        %s255 = smul.addr %s254, 8
        %s256 = scalar_lea.vmem %s3, %s255
      $region32: #{prefill_attn_forward.10} parent=15 // pred_fallthru
        _
      // Predicated region
      $region33: #{prefill_attn_forward.10} parent=15 // pred_check
        %p257 = pneg %p164
      $region34: #{prefill_attn_forward.10} parent=15 // pred_check_branch
        %259 = sbr.rel (%p257) target = $region36
      $region35: #{prefill_attn_forward.10} parent=15 // pred_region
        %p260 = scmp.lt.s32.totalorder %s18, 1
        %s261 = scalar_select %p260, %s18, 1
        %p262 = scmp.lt.s32.totalorder %s19, 0
        %s263 = scalar_select %p262, %s19, 0
        %s264 = sadd.s32 %s263, %s261
        %s265 = smul.addr %s264, 8
        %s266 = scalar_lea.vmem %s4, %s265
      $region36: #{prefill_attn_forward.10} parent=15 // pred_fallthru
        _
    $region16: #{prefill_attn_forward.10} parent=5 // pred_fallthru
      _
    %p267 = scmp.le.s32.totalorder 1, %s11
    %p268 = scmp.lt.s32.totalorder %s11, 3
    %p269 = pnand %p267, %p268
    %p270 = pneg %p269
    // Predicated region
    $region37: #{prefill_attn_forward.10} parent=5 // pred_check
      _
    $region38: #{prefill_attn_forward.10} parent=5 // pred_check_branch
      %272 = sbr.rel (%p269) target = $region40
    $region39: #{prefill_attn_forward.10} parent=5 // pred_region
      %s273 = ssub.s32 %s11, 1
      %p274 = scmp.lt.s32.totalorder %s21, 1
      %s275 = scalar_select %p274, %s21, 1
      %p276 = scmp.lt.s32.totalorder %s22, 0
      %s277 = scalar_select %p276, %s22, 0
      %s278 = sadd.s32 %s277, %s275
      %s279 = smul.addr %s278, 4
      %s280 = scalar_lea.vmem %s0, %s279
      %p281 = pneg %p58
      %p282 = pneg %p55
      %p283 = scmp.lt.s32.totalorder %s21, 1
      %s284 = scalar_select %p283, %s21, 1
      %p285 = scmp.lt.s32.totalorder %s23, 0
      %s286 = scalar_select %p285, %s23, 0
      %s287 = sadd.s32 %s286, %s284
      %s288 = smul.addr %s287, 4
      %s289 = scalar_lea.vmem %s1, %s288
      %p290 = pneg %p86
      %p291 = pneg %p83
      %p292 = scmp.lt.s32.totalorder %s21, 1
      %s293 = scalar_select %p292, %s21, 1
      %p294 = scmp.lt.s32.totalorder %s23, 0
      %s295 = scalar_select %p294, %s23, 0
      %s296 = sadd.s32 %s295, %s293
      %s297 = smul.addr %s296, 4
      %s298 = scalar_lea.vmem %s2, %s297
      %p299 = pneg %p114
      %p300 = pneg %p111
      %p301 = scmp.lt.s32.totalorder %s21, 1
      %s302 = scalar_select %p301, %s21, 1
      %p303 = scmp.lt.s32.totalorder %s22, 0
      %s304 = scalar_select %p303, %s22, 0
      %s305 = sadd.s32 %s304, %s302
      %s306 = smul.addr %s305, 8
      %s307 = scalar_lea.vmem %s3, %s306
      %p308 = pneg %p142
      %p309 = pneg %p139
      %p310 = scmp.lt.s32.totalorder %s21, 1
      %s311 = scalar_select %p310, %s21, 1
      %p312 = scmp.lt.s32.totalorder %s22, 0
      %s313 = scalar_select %p312, %s22, 0
      %s314 = sadd.s32 %s313, %s311
      %s315 = smul.addr %s314, 8
      %s316 = scalar_lea.vmem %s4, %s315
      %p317 = pneg %p170
      %p318 = pneg %p167
      %p319 = pneg %p198
      %p320 = pneg %p195
      %p321 = scmp.lt.s32.totalorder %s21, 1
      %s322 = scalar_select %p321, %s21, 1
      %p323 = scmp.lt.s32.totalorder %s22, 0
      %s324 = scalar_select %p323, %s22, 0
      %s325 = sadd.s32 %s324, %s322
      %s326 = smul.addr %s325, 4
      %s327 = scalar_lea.vmem %s5, %s326
      %p328 = scmp.lt.s32.totalorder %s21, 1
      %s329 = scalar_select %p328, %s21, 1
      %p330 = scmp.lt.s32.totalorder %s22, 0
      %s331 = scalar_select %p330, %s22, 0
      %s332 = sadd.s32 %s331, %s329
      %s333 = smul.addr %s332, 4
      %s334 = scalar_lea.vmem %s0, %s333
      %p335 = scmp.lt.s32.totalorder %s21, 1
      %s336 = scalar_select %p335, %s21, 1
      %p337 = scmp.lt.s32.totalorder %s23, 0
      %s338 = scalar_select %p337, %s23, 0
      %s339 = sadd.s32 %s338, %s336
      %s340 = smul.addr %s339, 4
      %s341 = scalar_lea.vmem %s1, %s340
      %p342 = scmp.lt.s32.totalorder %s21, 1
      %s343 = scalar_select %p342, %s21, 1
      %p344 = scmp.lt.s32.totalorder %s23, 0
      %s345 = scalar_select %p344, %s23, 0
      %s346 = sadd.s32 %s345, %s343
      %s347 = smul.addr %s346, 4
      %s348 = scalar_lea.vmem %s2, %s347
      %p349 = scmp.lt.s32.totalorder %s21, 1
      %s350 = scalar_select %p349, %s21, 1
      %p351 = scmp.lt.s32.totalorder %s22, 0
      %s352 = scalar_select %p351, %s22, 0
      %s353 = sadd.s32 %s352, %s350
      %s354 = smul.addr %s353, 8
      %s355 = scalar_lea.vmem %s3, %s354
      %p356 = scmp.lt.s32.totalorder %s21, 1
      %s357 = scalar_select %p356, %s21, 1
      %p358 = scmp.lt.s32.totalorder %s22, 0
      %s359 = scalar_select %p358, %s22, 0
      %s360 = sadd.s32 %s359, %s357
      %s361 = smul.addr %s360, 8
      %s362 = scalar_lea.vmem %s4, %s361
      %p363 = scmp.lt.s32.totalorder %s21, 1
      %s364 = scalar_select %p363, %s21, 1
      %p365 = scmp.lt.s32.totalorder %s22, 0
      %s366 = scalar_select %p365, %s22, 0
      %s367 = sadd.s32 %s366, %s364
      %s368 = smul.addr %s367, 4
      %s369 = scalar_lea.vmem %s5, %s368
      %p371 = scmp.eq.s32.totalorder %s23, 0
      // Predicated region
      $region41: #{prefill_attn_forward.10} parent=39 // pred_check
        %p372 = pneg %p371
      $region42: #{prefill_attn_forward.10} parent=39 // pred_check_branch
        %374 = sbr.rel (%p372) target = $region44
      $region43: #{prefill_attn_forward.10} parent=39 // pred_region
        %vm375 = vcmask 7168
        %376 = vst.msk [vmem:[#allocation2] sm:$0xff] %vm375, -inf
        %377 = vst.msk [vmem:[#allocation2 + $0x8] sm:$0xff] %vm375, -inf
        %378 = vst.msk [vmem:[#allocation3] sm:$0xff] %vm375, 0.0
        %379 = vst.msk [vmem:[#allocation3 + $0x8] sm:$0xff] %vm375, 0.0
        %vm380 = vcmask 261120
        %381 = vst.msk [vmem:[#allocation4] sm:$0xff] %vm380, 0.0
        %382 = vst.msk [vmem:[#allocation4 + $0x8] sm:$0xff] %vm380, 0.0
      $region44: #{prefill_attn_forward.10} parent=39 // pred_fallthru
        _
      %s383 = smul.u32 %s23, 8
      %s384 = sadd.s32 %s22, 1
      %s385 = smul.u32 %s384, 8
      %p386 = scmp.lt.s32.totalorder %s383, %s385
      // Predicated region
      $region45: #{prefill_attn_forward.10} parent=39 // pred_check
        %p387 = pneg %p386
      $region46: #{prefill_attn_forward.10} parent=39 // pred_check_branch
        %389 = sbr.rel (%p387) target = $region48
      $region47: #{prefill_attn_forward.10} parent=39 // pred_region
        %v390 = vld [vmem:[%s334] sm:$0xf]
        %v391 = vld [vmem:[%s341] sm:$0xf]
        %v392 = vld [vmem:[%s348] sm:$0xf]
        %v393 = vld [vmem:[%s355] sm:$0xff]
        %v394 = vld [vmem:[%s362] sm:$0xff]
        %s395 = smul.u32 %s22, 8
        %v396 = vlaneseq
        %v397 = vshrl.u32 %v396, 7
        %v398 = vstv %s395
        %v399 = vadd.s32 %v398, %v397
        %v400 = vlaneseq
        %v401 = vand.u32 %v400, 127
        %v402 = vstv %s383
        %v403 = vadd.s32 %v402, %v401
        %vm404 = vcmp.le.s32.totalorder %v403, %v399
        %v405 = vunpack.c.l.bf16 %v390
        %407 = vrot.lane.b32.xlu0 %v393, 64
        %v408 = vpop.permute.xlu0 %407
        %v410 = vmul.f32 %v405, %v408
        %412 = vrot.lane.b32.xlu0 %v394, 72
        %v413 = vpop.permute.xlu0 %412
        %v415 = vmul.f32 %v405, %v413
        %417 = vrot.lane.b32.xlu0 %v415, 120
        %v418 = vpop.permute.xlu0 %417
        %v420 = vsub.f32 %v410, %v418
        %421 = vrot.lane.b32.xlu0 %v393, 72
        %v422 = vpop.permute.xlu0 %421
        %v424 = vmul.f32 %v405, %v422
        %425 = vrot.lane.b32.xlu0 %v394, 64
        %v426 = vpop.permute.xlu0 %425
        %v428 = vmul.f32 %v405, %v426
        %430 = vrot.lane.b32.xlu0 %v428, 8
        %v431 = vpop.permute.xlu0 %430
        %v433 = vadd.f32 %v424, %v431
        %435 = vrot.lane.b32.xlu0 %v420, 64
        %v436 = vpop.permute.xlu0 %435
        %439 = vrot.lane.b32.xlu0 %v433, 64
        %v440 = vpop.permute.xlu0 %439
        %vm442 = vcmask 64512
        %v443 = vsel %vm442, %v436, %v440
        %v444 = vpack.c.bf16 %v443, %v443
        %446 = vrot.lane.b32.xlu0 %v444, 32
        %v447 = vpop.permute.xlu0 %446
        %vm448 = vcmask 261120
        %v451 = vsel %vm448, %v390, %v447
        %v453 = vunpack.c.l.b16 %v392
        %v454 = vpack.c.b16 %v453, %v453
        %455 = vrot.lane.b32.xlu0 %v454, 32
        %v456 = vpop.permute.xlu0 %455
        %v459 = vsel %vm448, %v391, %v456
        %vm460 = vcmask 392192
        %v461 = vsel %vm460, %v451, 0
        %v463 = vsel %vm460, %v459, 0
        %465 = vmatprep.subr.bf16.mxu0 0
        %466 = vmatpush1.bf16.xpose.msra.mxu0 %v463
        %467 = vmatprep.subr.bf16.mxu0 0
        %468 = vmatpush1.bf16.xpose.msra.mxu0 0
        %469 = vmatprep.subr.bf16.mxu0 0
        %470 = vmatpush1.bf16.xpose.msra.mxu0 0
        %471 = vmatprep.subr.bf16.mxu0 0
        %472 = vmatpush1.bf16.xpose.msra.mxu0 0
        %473 = vmatprep.subr.bf16.mxu0 0
        %474 = vmatpush1.bf16.xpose.msra.mxu0 0
        %475 = vmatprep.subr.bf16.mxu0 0
        %476 = vmatpush1.bf16.xpose.msra.mxu0 0
        %477 = vmatprep.subr.bf16.mxu0 0
        %478 = vmatpush1.bf16.xpose.msra.mxu0 0
        %479 = vmatprep.subr.bf16.mxu0 0
        %480 = vmatpush1.bf16.xpose.msra.mxu0 0
        %481 = vmatprep.subr.bf16.mxu0 0
        %482 = vmatpush1.bf16.xpose.msra.mxu0 0
        %483 = vmatprep.subr.bf16.mxu0 0
        %484 = vmatpush1.bf16.xpose.msra.mxu0 0
        %485 = vmatprep.subr.bf16.mxu0 0
        %486 = vmatpush1.bf16.xpose.msra.mxu0 0
        %487 = vmatprep.subr.bf16.mxu0 0
        %488 = vmatpush1.bf16.xpose.msra.mxu0 0
        %489 = vmatprep.subr.bf16.mxu0 0
        %490 = vmatpush1.bf16.xpose.msra.mxu0 0
        %491 = vmatprep.subr.bf16.mxu0 0
        %492 = vmatpush1.bf16.xpose.msra.mxu0 0
        %493 = vmatprep.subr.bf16.mxu0 0
        %494 = vmatpush1.bf16.xpose.msra.mxu0 0
        %495 = vmatprep.subr.bf16.mxu0 0
        %496 = vmatpush1.bf16.xpose.msra.mxu0 0
        %497 = vmatprep.mubr.bf16.mxu0 0
        %498 = vmatmul.mubr.bf16.gmra.mrb[0].mxu0 %v461
        %v499 = vpop.f32.mrb[0].mxu0
        %v500 = vadd.f32 0.0, %v499
        %v501 = vpop.f32.mrb[0].mxu0
        %v502 = vpop.f32.mrb[0].mxu0
        %v503 = vpop.f32.mrb[0].mxu0
        %504 = vdwg.mxu0
        %v505 = vmul.f32 %v500, 0.14433756
        %v506 = vsel %vm404, %v505, -1e+30
        %v507 = vld [vmem:[#allocation2] sm:$0xff]
        %v508 = vsel %vm442, %v506, -inf
        %509 = vmax.xlane.f32.xlu0 %v508
        %v510 = vpop.xlane.xlu0 %509
        %v511 = vmax.f32 %v507, %v510
        %v512 = vsub.f32 %v507, %v511
        %v513 = vmul.f32 %v512, 1.442695
        %v514 = vpow.pop %v513
        %516 = vset.pattern.permute.xlu0 0
        %517 = vperm.xlu0 %516, %v511
        %v518 = vpop.permute.xlu0 %517
        %v520 = vsub.f32 %v506, %v518
        %v521 = vmul.f32 %v520, 1.442695
        %v522 = vpow.pop %v521
        %v523 = vld [vmem:[#allocation3] sm:$0xff]
        %v524 = vmul.f32 %v514, %v523
        %v525 = vsel %vm442, %v522, 0.0
        %526 = vadd.xlane.f32.xlu0 %v525
        %v527 = vpop.xlane.xlu0 %526
        %v528 = vadd.f32 %v524, %v527
        %vm529 = vcmask 7168
        %530 = vst.msk [vmem:[#allocation3] sm:$0xff] %vm529, %v528
        %v531 = vld [vmem:[#allocation4] sm:$0xff]
        %533 = vset.pattern.permute.xlu0 0
        %534 = vperm.xlu0 %533, %v514
        %v535 = vpop.permute.xlu0 %534
        %v537 = vmul.f32 %v535, %v531
        %v538 = vpack.c.bf16 %v522, %v522
        %v540 = vunpack.c.l.b16 %v391
        %v541 = vpack.c.b16 %v540, %v540
        %542 = vrot.lane.b32.xlu0 %v541, 64
        %v543 = vpop.permute.xlu0 %542
        %v545 = vsel %vm442, %v538, 0
        %vm547 = vcmask 1043456
        %v549 = vsel %vm547, %v543, 0
        %551 = vmatprep.subr.bf16.mxu0 0
        %552 = vmatpush1.bf16.msra.mxu0 %v549
        %553 = vmatprep.subr.bf16.mxu0 0
        %554 = vmatpush1.bf16.msra.mxu0 0
        %555 = vmatprep.subr.bf16.mxu0 0
        %556 = vmatpush1.bf16.msra.mxu0 0
        %557 = vmatprep.subr.bf16.mxu0 0
        %558 = vmatpush1.bf16.msra.mxu0 0
        %559 = vmatprep.subr.bf16.mxu0 0
        %560 = vmatpush1.bf16.msra.mxu0 0
        %561 = vmatprep.subr.bf16.mxu0 0
        %562 = vmatpush1.bf16.msra.mxu0 0
        %563 = vmatprep.subr.bf16.mxu0 0
        %564 = vmatpush1.bf16.msra.mxu0 0
        %565 = vmatprep.subr.bf16.mxu0 0
        %566 = vmatpush1.bf16.msra.mxu0 0
        %567 = vmatprep.subr.bf16.mxu0 0
        %568 = vmatpush1.bf16.msra.mxu0 0
        %569 = vmatprep.subr.bf16.mxu0 0
        %570 = vmatpush1.bf16.msra.mxu0 0
        %571 = vmatprep.subr.bf16.mxu0 0
        %572 = vmatpush1.bf16.msra.mxu0 0
        %573 = vmatprep.subr.bf16.mxu0 0
        %574 = vmatpush1.bf16.msra.mxu0 0
        %575 = vmatprep.subr.bf16.mxu0 0
        %576 = vmatpush1.bf16.msra.mxu0 0
        %577 = vmatprep.subr.bf16.mxu0 0
        %578 = vmatpush1.bf16.msra.mxu0 0
        %579 = vmatprep.subr.bf16.mxu0 0
        %580 = vmatpush1.bf16.msra.mxu0 0
        %581 = vmatprep.subr.bf16.mxu0 0
        %582 = vmatpush1.bf16.msra.mxu0 0
        %583 = vmatprep.mubr.bf16.mxu0 0
        %584 = vmatmul.mubr.bf16.gmra.mrb[0].mxu0 %v545
        %v585 = vpop.f32.mrb[0].mxu0
        %v586 = vadd.f32 0.0, %v585
        %v587 = vpop.f32.mrb[0].mxu0
        %v588 = vpop.f32.mrb[0].mxu0
        %v589 = vpop.f32.mrb[0].mxu0
        %590 = vdwg.mxu0
        %v591 = vadd.f32 %v537, %v586
        %592 = vst.msk [vmem:[#allocation4] sm:$0xff] %vm448, %v591
        %593 = vst.msk [vmem:[#allocation2] sm:$0xff] %vm529, %v511
        %594 = vrot.lane.b32.xlu0 %v393, 80
        %v595 = vpop.permute.xlu0 %594
        %v597 = vmul.f32 %v405, %v595
        %598 = vrot.lane.b32.xlu0 %v394, 88
        %v599 = vpop.permute.xlu0 %598
        %v601 = vmul.f32 %v405, %v599
        %603 = vrot.lane.b32.xlu0 %v601, 120
        %v604 = vpop.permute.xlu0 %603
        %v606 = vsub.f32 %v597, %v604
        %607 = vrot.lane.b32.xlu0 %v393, 88
        %v608 = vpop.permute.xlu0 %607
        %v610 = vmul.f32 %v405, %v608
        %611 = vrot.lane.b32.xlu0 %v394, 80
        %v612 = vpop.permute.xlu0 %611
        %v614 = vmul.f32 %v405, %v612
        %616 = vrot.lane.b32.xlu0 %v614, 8
        %v617 = vpop.permute.xlu0 %616
        %v619 = vadd.f32 %v610, %v617
        %621 = vrot.lane.b32.xlu0 %v606, 48
        %v622 = vpop.permute.xlu0 %621
        %625 = vrot.lane.b32.xlu0 %v619, 48
        %v626 = vpop.permute.xlu0 %625
        %v628 = vsel %vm442, %v622, %v626
        %v629 = vpack.c.bf16 %v628, %v628
        %v631 = vunpack.c.l.b16 %v390
        %v632 = vpack.c.b16 %v631, %v631
        %633 = vrot.lane.b32.xlu0 %v632, 96
        %v634 = vpop.permute.xlu0 %633
        %636 = vrot.lane.b32.xlu0 %v629, 32
        %v637 = vpop.permute.xlu0 %636
        %v640 = vsel %vm448, %v634, %v637
        %641 = vrot.lane.b32.xlu0 %v541, 96
        %v642 = vpop.permute.xlu0 %641
        %v644 = vsel %vm448, %v642, %v456
        %v645 = vsel %vm460, %v640, 0
        %v647 = vsel %vm460, %v644, 0
        %649 = vmatprep.subr.bf16.mxu0 0
        %650 = vmatpush1.bf16.xpose.msra.mxu0 %v647
        %651 = vmatprep.subr.bf16.mxu0 0
        %652 = vmatpush1.bf16.xpose.msra.mxu0 0
        %653 = vmatprep.subr.bf16.mxu0 0
        %654 = vmatpush1.bf16.xpose.msra.mxu0 0
        %655 = vmatprep.subr.bf16.mxu0 0
        %656 = vmatpush1.bf16.xpose.msra.mxu0 0
        %657 = vmatprep.subr.bf16.mxu0 0
        %658 = vmatpush1.bf16.xpose.msra.mxu0 0
        %659 = vmatprep.subr.bf16.mxu0 0
        %660 = vmatpush1.bf16.xpose.msra.mxu0 0
        %661 = vmatprep.subr.bf16.mxu0 0
        %662 = vmatpush1.bf16.xpose.msra.mxu0 0
        %663 = vmatprep.subr.bf16.mxu0 0
        %664 = vmatpush1.bf16.xpose.msra.mxu0 0
        %665 = vmatprep.subr.bf16.mxu0 0
        %666 = vmatpush1.bf16.xpose.msra.mxu0 0
        %667 = vmatprep.subr.bf16.mxu0 0
        %668 = vmatpush1.bf16.xpose.msra.mxu0 0
        %669 = vmatprep.subr.bf16.mxu0 0
        %670 = vmatpush1.bf16.xpose.msra.mxu0 0
        %671 = vmatprep.subr.bf16.mxu0 0
        %672 = vmatpush1.bf16.xpose.msra.mxu0 0
        %673 = vmatprep.subr.bf16.mxu0 0
        %674 = vmatpush1.bf16.xpose.msra.mxu0 0
        %675 = vmatprep.subr.bf16.mxu0 0
        %676 = vmatpush1.bf16.xpose.msra.mxu0 0
        %677 = vmatprep.subr.bf16.mxu0 0
        %678 = vmatpush1.bf16.xpose.msra.mxu0 0
        %679 = vmatprep.subr.bf16.mxu0 0
        %680 = vmatpush1.bf16.xpose.msra.mxu0 0
        %681 = vmatprep.mubr.bf16.mxu0 0
        %682 = vmatmul.mubr.bf16.gmra.mrb[0].mxu0 %v645
        %v683 = vpop.f32.mrb[0].mxu0
        %v684 = vadd.f32 0.0, %v683
        %v685 = vpop.f32.mrb[0].mxu0
        %v686 = vpop.f32.mrb[0].mxu0
        %v687 = vpop.f32.mrb[0].mxu0
        %688 = vdwg.mxu0
        %v689 = vmul.f32 %v684, 0.14433756
        %v690 = vsel %vm404, %v689, -1e+30
        %s691 = scalar_lea.vmem [#allocation2], 8
        %v692 = vld [vmem:[%s691] sm:$0xff]
        %v693 = vsel %vm442, %v690, -inf
        %694 = vmax.xlane.f32.xlu0 %v693
        %v695 = vpop.xlane.xlu0 %694
        %v696 = vmax.f32 %v692, %v695
        %v697 = vsub.f32 %v692, %v696
        %v698 = vmul.f32 %v697, 1.442695
        %v699 = vpow.pop %v698
        %701 = vset.pattern.permute.xlu0 0
        %702 = vperm.xlu0 %701, %v696
        %v703 = vpop.permute.xlu0 %702
        %v705 = vsub.f32 %v690, %v703
        %v706 = vmul.f32 %v705, 1.442695
        %v707 = vpow.pop %v706
        %s708 = scalar_lea.vmem [#allocation3], 8
        %v709 = vld [vmem:[%s708] sm:$0xff]
        %v710 = vmul.f32 %v699, %v709
        %v711 = vsel %vm442, %v707, 0.0
        %712 = vadd.xlane.f32.xlu0 %v711
        %v713 = vpop.xlane.xlu0 %712
        %v714 = vadd.f32 %v710, %v713
        %715 = vst.msk [vmem:[%s708] sm:$0xff] %vm529, %v714
        %s716 = scalar_lea.vmem [#allocation4], 8
        %v717 = vld [vmem:[%s716] sm:$0xff]
        %719 = vset.pattern.permute.xlu0 0
        %720 = vperm.xlu0 %719, %v699
        %v721 = vpop.permute.xlu0 %720
        %v723 = vmul.f32 %v721, %v717
        %v724 = vpack.c.bf16 %v707, %v707
        %725 = vrot.lane.b32.xlu0 %v541, 32
        %v726 = vpop.permute.xlu0 %725
        %v728 = vsel %vm442, %v724, 0
        %v731 = vsel %vm547, %v726, 0
        %733 = vmatprep.subr.bf16.mxu0 0
        %734 = vmatpush1.bf16.msra.mxu0 %v731
        %735 = vmatprep.subr.bf16.mxu0 0
        %736 = vmatpush1.bf16.msra.mxu0 0
        %737 = vmatprep.subr.bf16.mxu0 0
        %738 = vmatpush1.bf16.msra.mxu0 0
        %739 = vmatprep.subr.bf16.mxu0 0
        %740 = vmatpush1.bf16.msra.mxu0 0
        %741 = vmatprep.subr.bf16.mxu0 0
        %742 = vmatpush1.bf16.msra.mxu0 0
        %743 = vmatprep.subr.bf16.mxu0 0
        %744 = vmatpush1.bf16.msra.mxu0 0
        %745 = vmatprep.subr.bf16.mxu0 0
        %746 = vmatpush1.bf16.msra.mxu0 0
        %747 = vmatprep.subr.bf16.mxu0 0
        %748 = vmatpush1.bf16.msra.mxu0 0
        %749 = vmatprep.subr.bf16.mxu0 0
        %750 = vmatpush1.bf16.msra.mxu0 0
        %751 = vmatprep.subr.bf16.mxu0 0
        %752 = vmatpush1.bf16.msra.mxu0 0
        %753 = vmatprep.subr.bf16.mxu0 0
        %754 = vmatpush1.bf16.msra.mxu0 0
        %755 = vmatprep.subr.bf16.mxu0 0
        %756 = vmatpush1.bf16.msra.mxu0 0
        %757 = vmatprep.subr.bf16.mxu0 0
        %758 = vmatpush1.bf16.msra.mxu0 0
        %759 = vmatprep.subr.bf16.mxu0 0
        %760 = vmatpush1.bf16.msra.mxu0 0
        %761 = vmatprep.subr.bf16.mxu0 0
        %762 = vmatpush1.bf16.msra.mxu0 0
        %763 = vmatprep.subr.bf16.mxu0 0
        %764 = vmatpush1.bf16.msra.mxu0 0
        %765 = vmatprep.mubr.bf16.mxu0 0
        %766 = vmatmul.mubr.bf16.gmra.mrb[0].mxu0 %v728
        %v767 = vpop.f32.mrb[0].mxu0
        %v768 = vadd.f32 0.0, %v767
        %v769 = vpop.f32.mrb[0].mxu0
        %v770 = vpop.f32.mrb[0].mxu0
        %v771 = vpop.f32.mrb[0].mxu0
        %772 = vdwg.mxu0
        %v773 = vadd.f32 %v723, %v768
        %774 = vst.msk [vmem:[%s716] sm:$0xff] %vm448, %v773
        %775 = vst.msk [vmem:[%s691] sm:$0xff] %vm529, %v696
      $region48: #{prefill_attn_forward.10} parent=39 // pred_fallthru
        _
      // Predicated region
      $region49: #{prefill_attn_forward.10} parent=39 // pred_check
        %p776 = pneg %p371
      $region50: #{prefill_attn_forward.10} parent=39 // pred_check_branch
        %778 = sbr.rel (%p776) target = $region52
      $region51: #{prefill_attn_forward.10} parent=39 // pred_region
        %v779 = vld [vmem:[#allocation4] sm:$0xff]
        %v780 = vld [vmem:[#allocation3] sm:$0xff]
        %v781 = vrcp.pop %v780
        %783 = vset.pattern.permute.xlu0 0
        %784 = vperm.xlu0 %783, %v781
        %v785 = vpop.permute.xlu0 %784
        %v787 = vmul.f32 %v779, %v785
        %s788 = scalar_lea.vmem [#allocation4], 8
        %v789 = vld [vmem:[%s788] sm:$0xff]
        %s790 = scalar_lea.vmem [#allocation3], 8
        %v791 = vld [vmem:[%s790] sm:$0xff]
        %v792 = vrcp.pop %v791
        %794 = vset.pattern.permute.xlu0 0
        %795 = vperm.xlu0 %794, %v792
        %v796 = vpop.permute.xlu0 %795
        %v798 = vmul.f32 %v789, %v796
        %800 = vrot.lane.b32.xlu0 %v798, 32
        %v801 = vpop.permute.xlu0 %800
        %vm803 = vcmask 261120
        %v804 = vsel %vm803, %v787, %v801
        %v805 = vpack.c.bf16 %v804, %v804
        %vm806 = vcmask 519168
        %807 = vst.msk [vmem:[%s369] sm:$0xf] %vm806, %v805
      $region52: #{prefill_attn_forward.10} parent=39 // pred_fallthru
        _
      %p808 = scmp.lt.s32.totalorder %s21, 1
      %s809 = scalar_select %p808, %s21, 1
      %p810 = scmp.lt.s32.totalorder %s22, 0
      %s811 = scalar_select %p810, %s22, 0
      %s812 = sadd.s32 %s811, %s809
      %s813 = smul.addr %s812, 4
      %s814 = scalar_lea.vmem %s5, %s813
      // Predicated region
      $region53: #{prefill_attn_forward.10} parent=39 // pred_check
        %p815 = pneg %p195
      $region54: #{prefill_attn_forward.10} parent=39 // pred_check_branch
        %817 = sbr.rel (%p815) target = $region56
      $region55: #{prefill_attn_forward.10} parent=39 // pred_region
        _
      $region56: #{prefill_attn_forward.10} parent=39 // pred_fallthru
        _
    $region40: #{prefill_attn_forward.10} parent=5 // pred_fallthru
      _
    %p818 = scmp.le.s32.totalorder 2, %s11
    // Predicated region
    $region57: #{prefill_attn_forward.10} parent=5 // pred_check
      %p819 = pneg %p818
    $region58: #{prefill_attn_forward.10} parent=5 // pred_check_branch
      %821 = sbr.rel (%p819) target = $region60
    $region59: #{prefill_attn_forward.10} parent=5 // pred_region
      %s822 = ssub.s32 %s11, 2
      // Predicated region
      $region61: #{prefill_attn_forward.10} parent=59 // pred_check
        %p823 = pneg %p201
      $region62: #{prefill_attn_forward.10} parent=59 // pred_check_branch
        %825 = sbr.rel (%p823) target = $region64
      $region63: #{prefill_attn_forward.10} parent=59 // pred_region
        %p826 = scmp.lt.s32.totalorder %s24, 1
        %s827 = scalar_select %p826, %s24, 1
        %p828 = scmp.lt.s32.totalorder %s25, 0
        %s829 = scalar_select %p828, %s25, 0
        %s830 = sadd.s32 %s829, %s827
        %s831 = smul.addr %s830, 4
        %s832 = scalar_lea.vmem %s5, %s831
      $region64: #{prefill_attn_forward.10} parent=59 // pred_fallthru
        _
    $region60: #{prefill_attn_forward.10} parent=5 // pred_fallthru
      _
  $region6: #{prefill_attn_forward.10} parent=0 // loop_footer
    %s15 = sadd.s32 1, %s11
  $region7: #{prefill_attn_forward.10} parent=0 // loop_footer_branch
    %10 = sbr.rel target = $region3
  $region8: #{prefill_attn_forward.10} parent=0 // loop_exit
    _

</llo_original>
